<compile_context>
chip_gen: v7x
topology: tpu7x:2x2x1
jax: 0.10.0
libtpu: 0.0.40
codegen_flags: <defaults>
</compile_context>

<pallas_src>
import functools

import jax
import jax.numpy as jnp
import numpy as np
from jax.experimental import pallas as pl
from jax.experimental.pallas import tpu as pltpu


# ----------------------------- fused kernel ---------------------------------

def _wavefront_lstm_kernel(L, S, Bp, H, *refs):
    """refs = [x2d, w_in, w_rec_0..w_rec_{L-1}, b_comb, lin_w, lin_b, out]."""
    G = 4 * H
    x_ref = refs[0]
    w_in_ref = refs[1]
    w_rec_refs = refs[2:2 + L]
    b_ref = refs[2 + L]
    lw_ref = refs[3 + L]
    lb_ref = refs[4 + L]
    out_ref = refs[5 + L]

    f32 = jnp.float32
    x2d = x_ref[...].astype(f32)                                 # (S*Bp, D_in)

    # Hoisted layer-0 input projection over all S*Bp rows, already laid out in
    # the combined (L*4H)-wide gate space (non-layer-0 columns are zero).
    xproj = jnp.dot(x2d, w_in_ref[...].astype(f32),
                    preferred_element_type=f32)                  # (S*Bp, L*4H)

    w_rec = [r[...].astype(f32) for r in w_rec_refs]             # each (H, L*4H)
    bias = jnp.broadcast_to(b_ref[...].astype(f32), (Bp, L * G))  # hoisted bcast

    h = [jnp.zeros((Bp, H), f32) for _ in range(L)]
    c = [jnp.zeros((Bp, H), f32) for _ in range(L)]
    out_rows = []

    # Wavefront schedule: at step w, layer l processes time t = w - l.
    for w in range(S + L - 1):
        gates = bias                                             # (Bp, L*4H)
        if w < S:                                                # layer-0 input slot
            gates = gates + xproj[w * Bp:(w + 1) * Bp, :]
        for l in range(L):
            # h[l] feeds layer l (recurrent) and layer l+1 (input). Skip the dot
            # while h[l] is still the zero init or no consumer is active.
            if 1 <= w - l <= S:
                gates = gates + jnp.dot(h[l], w_rec[l],
                                        preferred_element_type=f32)

        s = jax.nn.sigmoid(gates)                # one EUP call for all layers' gates

        for l in range(L):
            if not (l <= w <= l + S - 1):        # layer inactive at this wavefront
                continue
            b0 = l * G
            i_g = s[:, b0 + 0 * H: b0 + 1 * H]
            f_g = s[:, b0 + 1 * H: b0 + 2 * H]
            g_g = 2.0 * s[:, b0 + 2 * H: b0 + 3 * H] - 1.0       # tanh via pre-scaled sigmoid
            o_g = s[:, b0 + 3 * H: b0 + 4 * H]
            c_new = f_g * c[l] + i_g * g_g
            h_new = o_g * jnp.tanh(c_new)
            c[l] = c_new
            h[l] = h_new
            if l == L - 1:
                out_rows.append(h_new)           # time index w - (L-1), in order

    # Single materialization of the output sequence + fused Linear/softmax tail.
    h_seq = jnp.concatenate(out_rows, axis=0)                    # (S*Bp, H)
    logits = jnp.dot(h_seq, lw_ref[...].astype(f32),
                     preferred_element_type=f32) + lb_ref[...].astype(f32)
    m = jnp.max(logits, axis=-1, keepdims=True)
    e = jnp.exp(logits - m)
    denom = jnp.sum(e, axis=-1, keepdims=True)
    # TODO(synk): pad O to 128 lanes (mask padded logits to -inf) for a
    # lane-dense final store if O grows; negligible at O=8.
    out_ref[...] = (e * pl.reciprocal(denom, approx=False)).astype(out_ref.dtype)


# ------------------------------- wrapper -------------------------------------

def lstm_model_forward(x, params):
    """LSTMModel.forward: x (S, B, D_in) time-major -> (S, B, O) softmax probs."""
    S, B, D_in = x.shape
    layers = params["lstm"]
    L = len(layers)
    H = layers[0]["w_hh"].shape[0]
    O = params["lin_w"].shape[1]
    G = 4 * H
    Bp = max(8, -(-B // 8) * 8)          # pad batch to a sublane multiple (>= 8)
    dt = x.dtype

    # Pre-scale the g-gate columns by 2 so the kernel can recover
    # tanh(x) = 2*sigmoid(2x) - 1 from a single fused sigmoid over all gates.
    gscale = jnp.ones((G,), dt).at[2 * H:3 * H].set(2.0)

    # Layer-0 input projection weights embedded in the combined gate layout.
    w_in = jnp.zeros((D_in, L * G), dt).at[:, 0:G].set(layers[0]["w_ih"] * gscale)

    # Per-layer row blocks of the block matrix:
    # row block l -> [slot l: W_hh_l (recurrent), slot l+1: W_ih_{l+1} (inter-layer)].
    w_rec = []
    b_comb = jnp.zeros((1, L * G), dt)
    for l, layer in enumerate(layers):
        w_l = jnp.zeros((H, L * G), dt)
        w_l = w_l.at[:, l * G:(l + 1) * G].set(layer["w_hh"] * gscale)
        if l + 1 < L:
            w_l = w_l.at[:, (l + 1) * G:(l + 2) * G].set(layers[l + 1]["w_ih"] * gscale)
        w_rec.append(w_l)
        b_comb = b_comb.at[:, l * G:(l + 1) * G].set(layer["b"] * gscale)

    if Bp != B:
        x = jnp.pad(x, ((0, 0), (0, Bp - B), (0, 0)))
    x2d = x.reshape(S * Bp, D_in)

    inputs = [x2d, w_in, *w_rec, b_comb, params["lin_w"], params["lin_b"]]
    out2d = pl.pallas_call(
        functools.partial(_wavefront_lstm_kernel, L, S, Bp, H),
        out_shape=jax.ShapeDtypeStruct((S * Bp, O), dt),
        in_specs=[pl.BlockSpec(memory_space=pltpu.MemorySpace.VMEM)] * len(inputs),
        out_specs=pl.BlockSpec(memory_space=pltpu.MemorySpace.VMEM),
    )(*inputs)
    return out2d.reshape(S, Bp, O)[:, :B, :]


# ------------------------- parameter init & reference ------------------------

def init_params(key, input_dim, output_dim, hidden_dim, num_layers, dtype):
    """Deterministic init mimicking PyTorch's U(-1/sqrt(H), 1/sqrt(H))."""
    k = 1.0 / np.sqrt(hidden_dim)
    lstm_layers = []
    d_in = input_dim
    for _ in range(num_layers):
        key, k1, k2, k3, k4 = jax.random.split(key, 5)
        w_ih = jax.random.uniform(k1, (d_in, 4 * hidden_dim), dtype, -k, k)
        w_hh = jax.random.uniform(k2, (hidden_dim, 4 * hidden_dim), dtype, -k, k)
        b_ih = jax.random.uniform(k3, (4 * hidden_dim,), dtype, -k, k)
        b_hh = jax.random.uniform(k4, (4 * hidden_dim,), dtype, -k, k)
        lstm_layers.append({"w_ih": w_ih, "w_hh": w_hh,
                            "b": (b_ih + b_hh).reshape(1, 4 * hidden_dim)})
        d_in = hidden_dim
    key, k5, k6 = jax.random.split(key, 3)
    lin_w = jax.random.uniform(k5, (hidden_dim, output_dim), dtype, -k, k)
    lin_b = jax.random.uniform(k6, (output_dim,), dtype, -k, k).reshape(1, output_dim)
    return {"lstm": lstm_layers, "lin_w": lin_w, "lin_b": lin_b}


def reference_forward(x, params):
    """Pure-JAX reference of the same forward (for correctness check)."""
    S, B, _ = x.shape
    h_seq = x
    for layer in params["lstm"]:
        H = layer["w_hh"].shape[0]
        h = jnp.zeros((B, H), x.dtype)
        c = jnp.zeros((B, H), x.dtype)

        def step(carry, x_t, layer=layer, H=H):
            h, c = carry
            gates = x_t @ layer["w_ih"] + h @ layer["w_hh"] + layer["b"]
            i = jax.nn.sigmoid(gates[:, 0 * H:1 * H])
            f = jax.nn.sigmoid(gates[:, 1 * H:2 * H])
            g = jnp.tanh(gates[:, 2 * H:3 * H])
            o = jax.nn.sigmoid(gates[:, 3 * H:4 * H])
            c = f * c + i * g
            h = o * jnp.tanh(c)
            return (h, c), h

        (_, _), h_seq = jax.lax.scan(step, (h, c), h_seq)
    logits = h_seq @ params["lin_w"] + params["lin_b"]
    return jax.nn.softmax(logits, axis=-1)


# --------------------------------- main --------------------------------------

if __name__ == "__main__":
    input_dim, output_dim, hidden_dim, num_layers = 16, 8, 32, 2
    seq_len, batch = 8, 2
    dtype = jnp.float32

    key = jax.random.PRNGKey(0)
    key, kx = jax.random.split(key)
    x = jax.random.normal(kx, (seq_len, batch, input_dim), dtype)  # (S, B, D)

    params = init_params(key, input_dim, output_dim, hidden_dim, num_layers, dtype)

    out = jax.jit(lstm_model_forward)(x, params)
    out = jax.block_until_ready(out)

    ref = reference_forward(x, params)
    # tanh of the g gate is computed as 2*sigmoid(2x)-1 in-kernel (exact identity,
    # slightly different rounding), hence the marginally relaxed tolerance.
    np.testing.assert_allclose(np.asarray(out), np.asarray(ref),
                               rtol=2e-4, atol=2e-5)
    assert out.shape == (seq_len, batch, output_dim)

    print("KERNEL_OK")
</pallas_src>

<mosaic_0001>
module attributes {stable_mosaic.version = 11 : i64} {
  func.func @_wavefront_lstm_kernel(%arg0: memref<64x16xf32, #tpu.memory_space<vmem>>, %arg1: memref<16x256xf32, #tpu.memory_space<vmem>>, %arg2: memref<32x256xf32, #tpu.memory_space<vmem>>, %arg3: memref<32x256xf32, #tpu.memory_space<vmem>>, %arg4: memref<1x256xf32, #tpu.memory_space<vmem>>, %arg5: memref<32x8xf32, #tpu.memory_space<vmem>>, %arg6: memref<1x8xf32, #tpu.memory_space<vmem>>, %arg7: memref<64x8xf32, #tpu.memory_space<vmem>>) attributes {dimension_semantics = [], scalar_prefetch = 0 : i64, scratch_operands = 0 : i64, tpu.core_type = #tpu.core_type<tc>} {
    %c0 = arith.constant 0 : index
    %c0_0 = arith.constant 0 : index
    %0 = vector.load %arg0[%c0, %c0_0] : memref<64x16xf32, #tpu.memory_space<vmem>>, vector<64x16xf32>
    %c0_1 = arith.constant 0 : index
    %c0_2 = arith.constant 0 : index
    %1 = vector.load %arg1[%c0_1, %c0_2] : memref<16x256xf32, #tpu.memory_space<vmem>>, vector<16x256xf32>
    %cst = arith.constant dense<0.000000e+00> : vector<64x256xf32>
    %2 = tpu.matmul %0, %1, %cst {dimension_numbers = #tpu.dot_dimension_numbers<[1], [0], [0], [1], [0, 0, 1, 1], [], []>} : vector<64x16xf32>, vector<16x256xf32>, vector<64x256xf32> -> vector<64x256xf32>
    %c0_3 = arith.constant 0 : index
    %c0_4 = arith.constant 0 : index
    %3 = vector.load %arg2[%c0_3, %c0_4] : memref<32x256xf32, #tpu.memory_space<vmem>>, vector<32x256xf32>
    %c0_5 = arith.constant 0 : index
    %c0_6 = arith.constant 0 : index
    %4 = vector.load %arg3[%c0_5, %c0_6] : memref<32x256xf32, #tpu.memory_space<vmem>>, vector<32x256xf32>
    %c0_7 = arith.constant 0 : index
    %c0_8 = arith.constant 0 : index
    %5 = vector.load %arg4[%c0_7, %c0_8] : memref<1x256xf32, #tpu.memory_space<vmem>>, vector<1x256xf32>
    %6 = vector.shape_cast %5 : vector<1x256xf32> to vector<1x256xf32>
    %7 = vector.broadcast %6 : vector<1x256xf32> to vector<8x256xf32>
    %cst_9 = arith.constant 0.000000e+00 : f32
    %8 = vector.broadcast %cst_9 : f32 to vector<8x32xf32>
    %cst_10 = arith.constant 0.000000e+00 : f32
    %9 = vector.broadcast %cst_10 : f32 to vector<8x32xf32>
    %10 = vector.extract_strided_slice %2 {offsets = [0, 0], sizes = [8, 256], strides = [1, 1]} : vector<64x256xf32> to vector<8x256xf32>
    %11 = arith.addf %7, %10 : vector<8x256xf32>
    %12 = arith.negf %11 : vector<8x256xf32>
    %13 = math.exp %12 : vector<8x256xf32>
    %cst_11 = arith.constant 1.000000e+00 : f32
    %14 = vector.broadcast %cst_11 : f32 to vector<8x256xf32>
    %15 = arith.addf %14, %13 : vector<8x256xf32>
    %16 = arith.divf %14, %15 : vector<8x256xf32>
    %17 = vector.extract_strided_slice %16 {offsets = [0, 0], sizes = [8, 32], strides = [1, 1]} : vector<8x256xf32> to vector<8x32xf32>
    %18 = vector.extract_strided_slice %16 {offsets = [0, 32], sizes = [8, 32], strides = [1, 1]} : vector<8x256xf32> to vector<8x32xf32>
    %19 = vector.extract_strided_slice %16 {offsets = [0, 64], sizes = [8, 32], strides = [1, 1]} : vector<8x256xf32> to vector<8x32xf32>
    %cst_12 = arith.constant 2.000000e+00 : f32
    %20 = vector.broadcast %cst_12 : f32 to vector<8x32xf32>
    %21 = arith.mulf %20, %19 : vector<8x32xf32>
    %cst_13 = arith.constant 1.000000e+00 : f32
    %22 = vector.broadcast %cst_13 : f32 to vector<8x32xf32>
    %23 = arith.subf %21, %22 : vector<8x32xf32>
    %24 = vector.extract_strided_slice %16 {offsets = [0, 96], sizes = [8, 32], strides = [1, 1]} : vector<8x256xf32> to vector<8x32xf32>
    %25 = arith.mulf %18, %8 : vector<8x32xf32>
    %26 = arith.mulf %17, %23 : vector<8x32xf32>
    %27 = arith.addf %25, %26 : vector<8x32xf32>
    %28 = math.tanh %27 : vector<8x32xf32>
    %29 = arith.mulf %24, %28 : vector<8x32xf32>
    %30 = vector.extract_strided_slice %2 {offsets = [8, 0], sizes = [8, 256], strides = [1, 1]} : vector<64x256xf32> to vector<8x256xf32>
    %31 = arith.addf %7, %30 : vector<8x256xf32>
    %cst_14 = arith.constant dense<0.000000e+00> : vector<8x256xf32>
    %32 = tpu.matmul %29, %3, %cst_14 {dimension_numbers = #tpu.dot_dimension_numbers<[1], [0], [0], [1], [0, 0, 1, 1], [], []>} : vector<8x32xf32>, vector<32x256xf32>, vector<8x256xf32> -> vector<8x256xf32>
    %33 = arith.addf %31, %32 : vector<8x256xf32>
    %34 = arith.negf %33 : vector<8x256xf32>
    %35 = math.exp %34 : vector<8x256xf32>
    %cst_15 = arith.constant 1.000000e+00 : f32
    %36 = vector.broadcast %cst_15 : f32 to vector<8x256xf32>
    %37 = arith.addf %36, %35 : vector<8x256xf32>
    %38 = arith.divf %36, %37 : vector<8x256xf32>
    %39 = vector.extract_strided_slice %38 {offsets = [0, 0], sizes = [8, 32], strides = [1, 1]} : vector<8x256xf32> to vector<8x32xf32>
    %40 = vector.extract_strided_slice %38 {offsets = [0, 32], sizes = [8, 32], strides = [1, 1]} : vector<8x256xf32> to vector<8x32xf32>
    %41 = vector.extract_strided_slice %38 {offsets = [0, 64], sizes = [8, 32], strides = [1, 1]} : vector<8x256xf32> to vector<8x32xf32>
    %cst_16 = arith.constant 2.000000e+00 : f32
    %42 = vector.broadcast %cst_16 : f32 to vector<8x32xf32>
    %43 = arith.mulf %42, %41 : vector<8x32xf32>
    %cst_17 = arith.constant 1.000000e+00 : f32
    %44 = vector.broadcast %cst_17 : f32 to vector<8x32xf32>
    %45 = arith.subf %43, %44 : vector<8x32xf32>
    %46 = vector.extract_strided_slice %38 {offsets = [0, 96], sizes = [8, 32], strides = [1, 1]} : vector<8x256xf32> to vector<8x32xf32>
    %47 = arith.mulf %40, %27 : vector<8x32xf32>
    %48 = arith.mulf %39, %45 : vector<8x32xf32>
    %49 = arith.addf %47, %48 : vector<8x32xf32>
    %50 = math.tanh %49 : vector<8x32xf32>
    %51 = arith.mulf %46, %50 : vector<8x32xf32>
    %52 = vector.extract_strided_slice %38 {offsets = [0, 128], sizes = [8, 32], strides = [1, 1]} : vector<8x256xf32> to vector<8x32xf32>
    %53 = vector.extract_strided_slice %38 {offsets = [0, 160], sizes = [8, 32], strides = [1, 1]} : vector<8x256xf32> to vector<8x32xf32>
    %54 = vector.extract_strided_slice %38 {offsets = [0, 192], sizes = [8, 32], strides = [1, 1]} : vector<8x256xf32> to vector<8x32xf32>
    %cst_18 = arith.constant 2.000000e+00 : f32
    %55 = vector.broadcast %cst_18 : f32 to vector<8x32xf32>
    %56 = arith.mulf %55, %54 : vector<8x32xf32>
    %cst_19 = arith.constant 1.000000e+00 : f32
    %57 = vector.broadcast %cst_19 : f32 to vector<8x32xf32>
    %58 = arith.subf %56, %57 : vector<8x32xf32>
    %59 = vector.extract_strided_slice %38 {offsets = [0, 224], sizes = [8, 32], strides = [1, 1]} : vector<8x256xf32> to vector<8x32xf32>
    %60 = arith.mulf %53, %9 : vector<8x32xf32>
    %61 = arith.mulf %52, %58 : vector<8x32xf32>
    %62 = arith.addf %60, %61 : vector<8x32xf32>
    %63 = math.tanh %62 : vector<8x32xf32>
    %64 = arith.mulf %59, %63 : vector<8x32xf32>
    %65 = vector.extract_strided_slice %2 {offsets = [16, 0], sizes = [8, 256], strides = [1, 1]} : vector<64x256xf32> to vector<8x256xf32>
    %66 = arith.addf %7, %65 : vector<8x256xf32>
    %cst_20 = arith.constant dense<0.000000e+00> : vector<8x256xf32>
    %67 = tpu.matmul %51, %3, %cst_20 {dimension_numbers = #tpu.dot_dimension_numbers<[1], [0], [0], [1], [0, 0, 1, 1], [], []>} : vector<8x32xf32>, vector<32x256xf32>, vector<8x256xf32> -> vector<8x256xf32>
    %68 = arith.addf %66, %67 : vector<8x256xf32>
    %cst_21 = arith.constant dense<0.000000e+00> : vector<8x256xf32>
    %69 = tpu.matmul %64, %4, %cst_21 {dimension_numbers = #tpu.dot_dimension_numbers<[1], [0], [0], [1], [0, 0, 1, 1], [], []>} : vector<8x32xf32>, vector<32x256xf32>, vector<8x256xf32> -> vector<8x256xf32>
    %70 = arith.addf %68, %69 : vector<8x256xf32>
    %71 = arith.negf %70 : vector<8x256xf32>
    %72 = math.exp %71 : vector<8x256xf32>
    %cst_22 = arith.constant 1.000000e+00 : f32
    %73 = vector.broadcast %cst_22 : f32 to vector<8x256xf32>
    %74 = arith.addf %73, %72 : vector<8x256xf32>
    %75 = arith.divf %73, %74 : vector<8x256xf32>
    %76 = vector.extract_strided_slice %75 {offsets = [0, 0], sizes = [8, 32], strides = [1, 1]} : vector<8x256xf32> to vector<8x32xf32>
    %77 = vector.extract_strided_slice %75 {offsets = [0, 32], sizes = [8, 32], strides = [1, 1]} : vector<8x256xf32> to vector<8x32xf32>
    %78 = vector.extract_strided_slice %75 {offsets = [0, 64], sizes = [8, 32], strides = [1, 1]} : vector<8x256xf32> to vector<8x32xf32>
    %cst_23 = arith.constant 2.000000e+00 : f32
    %79 = vector.broadcast %cst_23 : f32 to vector<8x32xf32>
    %80 = arith.mulf %79, %78 : vector<8x32xf32>
    %cst_24 = arith.constant 1.000000e+00 : f32
    %81 = vector.broadcast %cst_24 : f32 to vector<8x32xf32>
    %82 = arith.subf %80, %81 : vector<8x32xf32>
    %83 = vector.extract_strided_slice %75 {offsets = [0, 96], sizes = [8, 32], strides = [1, 1]} : vector<8x256xf32> to vector<8x32xf32>
    %84 = arith.mulf %77, %49 : vector<8x32xf32>
    %85 = arith.mulf %76, %82 : vector<8x32xf32>
    %86 = arith.addf %84, %85 : vector<8x32xf32>
    %87 = math.tanh %86 : vector<8x32xf32>
    %88 = arith.mulf %83, %87 : vector<8x32xf32>
    %89 = vector.extract_strided_slice %75 {offsets = [0, 128], sizes = [8, 32], strides = [1, 1]} : vector<8x256xf32> to vector<8x32xf32>
    %90 = vector.extract_strided_slice %75 {offsets = [0, 160], sizes = [8, 32], strides = [1, 1]} : vector<8x256xf32> to vector<8x32xf32>
    %91 = vector.extract_strided_slice %75 {offsets = [0, 192], sizes = [8, 32], strides = [1, 1]} : vector<8x256xf32> to vector<8x32xf32>
    %cst_25 = arith.constant 2.000000e+00 : f32
    %92 = vector.broadcast %cst_25 : f32 to vector<8x32xf32>
    %93 = arith.mulf %92, %91 : vector<8x32xf32>
    %cst_26 = arith.constant 1.000000e+00 : f32
    %94 = vector.broadcast %cst_26 : f32 to vector<8x32xf32>
    %95 = arith.subf %93, %94 : vector<8x32xf32>
    %96 = vector.extract_strided_slice %75 {offsets = [0, 224], sizes = [8, 32], strides = [1, 1]} : vector<8x256xf32> to vector<8x32xf32>
    %97 = arith.mulf %90, %62 : vector<8x32xf32>
    %98 = arith.mulf %89, %95 : vector<8x32xf32>
    %99 = arith.addf %97, %98 : vector<8x32xf32>
    %100 = math.tanh %99 : vector<8x32xf32>
    %101 = arith.mulf %96, %100 : vector<8x32xf32>
    %102 = vector.extract_strided_slice %2 {offsets = [24, 0], sizes = [8, 256], strides = [1, 1]} : vector<64x256xf32> to vector<8x256xf32>
    %103 = arith.addf %7, %102 : vector<8x256xf32>
    %cst_27 = arith.constant dense<0.000000e+00> : vector<8x256xf32>
    %104 = tpu.matmul %88, %3, %cst_27 {dimension_numbers = #tpu.dot_dimension_numbers<[1], [0], [0], [1], [0, 0, 1, 1], [], []>} : vector<8x32xf32>, vector<32x256xf32>, vector<8x256xf32> -> vector<8x256xf32>
    %105 = arith.addf %103, %104 : vector<8x256xf32>
    %cst_28 = arith.constant dense<0.000000e+00> : vector<8x256xf32>
    %106 = tpu.matmul %101, %4, %cst_28 {dimension_numbers = #tpu.dot_dimension_numbers<[1], [0], [0], [1], [0, 0, 1, 1], [], []>} : vector<8x32xf32>, vector<32x256xf32>, vector<8x256xf32> -> vector<8x256xf32>
    %107 = arith.addf %105, %106 : vector<8x256xf32>
    %108 = arith.negf %107 : vector<8x256xf32>
    %109 = math.exp %108 : vector<8x256xf32>
    %cst_29 = arith.constant 1.000000e+00 : f32
    %110 = vector.broadcast %cst_29 : f32 to vector<8x256xf32>
    %111 = arith.addf %110, %109 : vector<8x256xf32>
    %112 = arith.divf %110, %111 : vector<8x256xf32>
    %113 = vector.extract_strided_slice %112 {offsets = [0, 0], sizes = [8, 32], strides = [1, 1]} : vector<8x256xf32> to vector<8x32xf32>
    %114 = vector.extract_strided_slice %112 {offsets = [0, 32], sizes = [8, 32], strides = [1, 1]} : vector<8x256xf32> to vector<8x32xf32>
    %115 = vector.extract_strided_slice %112 {offsets = [0, 64], sizes = [8, 32], strides = [1, 1]} : vector<8x256xf32> to vector<8x32xf32>
    %cst_30 = arith.constant 2.000000e+00 : f32
    %116 = vector.broadcast %cst_30 : f32 to vector<8x32xf32>
    %117 = arith.mulf %116, %115 : vector<8x32xf32>
    %cst_31 = arith.constant 1.000000e+00 : f32
    %118 = vector.broadcast %cst_31 : f32 to vector<8x32xf32>
    %119 = arith.subf %117, %118 : vector<8x32xf32>
    %120 = vector.extract_strided_slice %112 {offsets = [0, 96], sizes = [8, 32], strides = [1, 1]} : vector<8x256xf32> to vector<8x32xf32>
    %121 = arith.mulf %114, %86 : vector<8x32xf32>
    %122 = arith.mulf %113, %119 : vector<8x32xf32>
    %123 = arith.addf %121, %122 : vector<8x32xf32>
    %124 = math.tanh %123 : vector<8x32xf32>
    %125 = arith.mulf %120, %124 : vector<8x32xf32>
    %126 = vector.extract_strided_slice %112 {offsets = [0, 128], sizes = [8, 32], strides = [1, 1]} : vector<8x256xf32> to vector<8x32xf32>
    %127 = vector.extract_strided_slice %112 {offsets = [0, 160], sizes = [8, 32], strides = [1, 1]} : vector<8x256xf32> to vector<8x32xf32>
    %128 = vector.extract_strided_slice %112 {offsets = [0, 192], sizes = [8, 32], strides = [1, 1]} : vector<8x256xf32> to vector<8x32xf32>
    %cst_32 = arith.constant 2.000000e+00 : f32
    %129 = vector.broadcast %cst_32 : f32 to vector<8x32xf32>
    %130 = arith.mulf %129, %128 : vector<8x32xf32>
    %cst_33 = arith.constant 1.000000e+00 : f32
    %131 = vector.broadcast %cst_33 : f32 to vector<8x32xf32>
    %132 = arith.subf %130, %131 : vector<8x32xf32>
    %133 = vector.extract_strided_slice %112 {offsets = [0, 224], sizes = [8, 32], strides = [1, 1]} : vector<8x256xf32> to vector<8x32xf32>
    %134 = arith.mulf %127, %99 : vector<8x32xf32>
    %135 = arith.mulf %126, %132 : vector<8x32xf32>
    %136 = arith.addf %134, %135 : vector<8x32xf32>
    %137 = math.tanh %136 : vector<8x32xf32>
    %138 = arith.mulf %133, %137 : vector<8x32xf32>
    %139 = vector.extract_strided_slice %2 {offsets = [32, 0], sizes = [8, 256], strides = [1, 1]} : vector<64x256xf32> to vector<8x256xf32>
    %140 = arith.addf %7, %139 : vector<8x256xf32>
    %cst_34 = arith.constant dense<0.000000e+00> : vector<8x256xf32>
    %141 = tpu.matmul %125, %3, %cst_34 {dimension_numbers = #tpu.dot_dimension_numbers<[1], [0], [0], [1], [0, 0, 1, 1], [], []>} : vector<8x32xf32>, vector<32x256xf32>, vector<8x256xf32> -> vector<8x256xf32>
    %142 = arith.addf %140, %141 : vector<8x256xf32>
    %cst_35 = arith.constant dense<0.000000e+00> : vector<8x256xf32>
    %143 = tpu.matmul %138, %4, %cst_35 {dimension_numbers = #tpu.dot_dimension_numbers<[1], [0], [0], [1], [0, 0, 1, 1], [], []>} : vector<8x32xf32>, vector<32x256xf32>, vector<8x256xf32> -> vector<8x256xf32>
    %144 = arith.addf %142, %143 : vector<8x256xf32>
    %145 = arith.negf %144 : vector<8x256xf32>
    %146 = math.exp %145 : vector<8x256xf32>
    %cst_36 = arith.constant 1.000000e+00 : f32
    %147 = vector.broadcast %cst_36 : f32 to vector<8x256xf32>
    %148 = arith.addf %147, %146 : vector<8x256xf32>
    %149 = arith.divf %147, %148 : vector<8x256xf32>
    %150 = vector.extract_strided_slice %149 {offsets = [0, 0], sizes = [8, 32], strides = [1, 1]} : vector<8x256xf32> to vector<8x32xf32>
    %151 = vector.extract_strided_slice %149 {offsets = [0, 32], sizes = [8, 32], strides = [1, 1]} : vector<8x256xf32> to vector<8x32xf32>
    %152 = vector.extract_strided_slice %149 {offsets = [0, 64], sizes = [8, 32], strides = [1, 1]} : vector<8x256xf32> to vector<8x32xf32>
    %cst_37 = arith.constant 2.000000e+00 : f32
    %153 = vector.broadcast %cst_37 : f32 to vector<8x32xf32>
    %154 = arith.mulf %153, %152 : vector<8x32xf32>
    %cst_38 = arith.constant 1.000000e+00 : f32
    %155 = vector.broadcast %cst_38 : f32 to vector<8x32xf32>
    %156 = arith.subf %154, %155 : vector<8x32xf32>
    %157 = vector.extract_strided_slice %149 {offsets = [0, 96], sizes = [8, 32], strides = [1, 1]} : vector<8x256xf32> to vector<8x32xf32>
    %158 = arith.mulf %151, %123 : vector<8x32xf32>
    %159 = arith.mulf %150, %156 : vector<8x32xf32>
    %160 = arith.addf %158, %159 : vector<8x32xf32>
    %161 = math.tanh %160 : vector<8x32xf32>
    %162 = arith.mulf %157, %161 : vector<8x32xf32>
    %163 = vector.extract_strided_slice %149 {offsets = [0, 128], sizes = [8, 32], strides = [1, 1]} : vector<8x256xf32> to vector<8x32xf32>
    %164 = vector.extract_strided_slice %149 {offsets = [0, 160], sizes = [8, 32], strides = [1, 1]} : vector<8x256xf32> to vector<8x32xf32>
    %165 = vector.extract_strided_slice %149 {offsets = [0, 192], sizes = [8, 32], strides = [1, 1]} : vector<8x256xf32> to vector<8x32xf32>
    %cst_39 = arith.constant 2.000000e+00 : f32
    %166 = vector.broadcast %cst_39 : f32 to vector<8x32xf32>
    %167 = arith.mulf %166, %165 : vector<8x32xf32>
    %cst_40 = arith.constant 1.000000e+00 : f32
    %168 = vector.broadcast %cst_40 : f32 to vector<8x32xf32>
    %169 = arith.subf %167, %168 : vector<8x32xf32>
    %170 = vector.extract_strided_slice %149 {offsets = [0, 224], sizes = [8, 32], strides = [1, 1]} : vector<8x256xf32> to vector<8x32xf32>
    %171 = arith.mulf %164, %136 : vector<8x32xf32>
    %172 = arith.mulf %163, %169 : vector<8x32xf32>
    %173 = arith.addf %171, %172 : vector<8x32xf32>
    %174 = math.tanh %173 : vector<8x32xf32>
    %175 = arith.mulf %170, %174 : vector<8x32xf32>
    %176 = vector.extract_strided_slice %2 {offsets = [40, 0], sizes = [8, 256], strides = [1, 1]} : vector<64x256xf32> to vector<8x256xf32>
    %177 = arith.addf %7, %176 : vector<8x256xf32>
    %cst_41 = arith.constant dense<0.000000e+00> : vector<8x256xf32>
    %178 = tpu.matmul %162, %3, %cst_41 {dimension_numbers = #tpu.dot_dimension_numbers<[1], [0], [0], [1], [0, 0, 1, 1], [], []>} : vector<8x32xf32>, vector<32x256xf32>, vector<8x256xf32> -> vector<8x256xf32>
    %179 = arith.addf %177, %178 : vector<8x256xf32>
    %cst_42 = arith.constant dense<0.000000e+00> : vector<8x256xf32>
    %180 = tpu.matmul %175, %4, %cst_42 {dimension_numbers = #tpu.dot_dimension_numbers<[1], [0], [0], [1], [0, 0, 1, 1], [], []>} : vector<8x32xf32>, vector<32x256xf32>, vector<8x256xf32> -> vector<8x256xf32>
    %181 = arith.addf %179, %180 : vector<8x256xf32>
    %182 = arith.negf %181 : vector<8x256xf32>
    %183 = math.exp %182 : vector<8x256xf32>
    %cst_43 = arith.constant 1.000000e+00 : f32
    %184 = vector.broadcast %cst_43 : f32 to vector<8x256xf32>
    %185 = arith.addf %184, %183 : vector<8x256xf32>
    %186 = arith.divf %184, %185 : vector<8x256xf32>
    %187 = vector.extract_strided_slice %186 {offsets = [0, 0], sizes = [8, 32], strides = [1, 1]} : vector<8x256xf32> to vector<8x32xf32>
    %188 = vector.extract_strided_slice %186 {offsets = [0, 32], sizes = [8, 32], strides = [1, 1]} : vector<8x256xf32> to vector<8x32xf32>
    %189 = vector.extract_strided_slice %186 {offsets = [0, 64], sizes = [8, 32], strides = [1, 1]} : vector<8x256xf32> to vector<8x32xf32>
    %cst_44 = arith.constant 2.000000e+00 : f32
    %190 = vector.broadcast %cst_44 : f32 to vector<8x32xf32>
    %191 = arith.mulf %190, %189 : vector<8x32xf32>
    %cst_45 = arith.constant 1.000000e+00 : f32
    %192 = vector.broadcast %cst_45 : f32 to vector<8x32xf32>
    %193 = arith.subf %191, %192 : vector<8x32xf32>
    %194 = vector.extract_strided_slice %186 {offsets = [0, 96], sizes = [8, 32], strides = [1, 1]} : vector<8x256xf32> to vector<8x32xf32>
    %195 = arith.mulf %188, %160 : vector<8x32xf32>
    %196 = arith.mulf %187, %193 : vector<8x32xf32>
    %197 = arith.addf %195, %196 : vector<8x32xf32>
    %198 = math.tanh %197 : vector<8x32xf32>
    %199 = arith.mulf %194, %198 : vector<8x32xf32>
    %200 = vector.extract_strided_slice %186 {offsets = [0, 128], sizes = [8, 32], strides = [1, 1]} : vector<8x256xf32> to vector<8x32xf32>
    %201 = vector.extract_strided_slice %186 {offsets = [0, 160], sizes = [8, 32], strides = [1, 1]} : vector<8x256xf32> to vector<8x32xf32>
    %202 = vector.extract_strided_slice %186 {offsets = [0, 192], sizes = [8, 32], strides = [1, 1]} : vector<8x256xf32> to vector<8x32xf32>
    %cst_46 = arith.constant 2.000000e+00 : f32
    %203 = vector.broadcast %cst_46 : f32 to vector<8x32xf32>
    %204 = arith.mulf %203, %202 : vector<8x32xf32>
    %cst_47 = arith.constant 1.000000e+00 : f32
    %205 = vector.broadcast %cst_47 : f32 to vector<8x32xf32>
    %206 = arith.subf %204, %205 : vector<8x32xf32>
    %207 = vector.extract_strided_slice %186 {offsets = [0, 224], sizes = [8, 32], strides = [1, 1]} : vector<8x256xf32> to vector<8x32xf32>
    %208 = arith.mulf %201, %173 : vector<8x32xf32>
    %209 = arith.mulf %200, %206 : vector<8x32xf32>
    %210 = arith.addf %208, %209 : vector<8x32xf32>
    %211 = math.tanh %210 : vector<8x32xf32>
    %212 = arith.mulf %207, %211 : vector<8x32xf32>
    %213 = vector.extract_strided_slice %2 {offsets = [48, 0], sizes = [8, 256], strides = [1, 1]} : vector<64x256xf32> to vector<8x256xf32>
    %214 = arith.addf %7, %213 : vector<8x256xf32>
    %cst_48 = arith.constant dense<0.000000e+00> : vector<8x256xf32>
    %215 = tpu.matmul %199, %3, %cst_48 {dimension_numbers = #tpu.dot_dimension_numbers<[1], [0], [0], [1], [0, 0, 1, 1], [], []>} : vector<8x32xf32>, vector<32x256xf32>, vector<8x256xf32> -> vector<8x256xf32>
    %216 = arith.addf %214, %215 : vector<8x256xf32>
    %cst_49 = arith.constant dense<0.000000e+00> : vector<8x256xf32>
    %217 = tpu.matmul %212, %4, %cst_49 {dimension_numbers = #tpu.dot_dimension_numbers<[1], [0], [0], [1], [0, 0, 1, 1], [], []>} : vector<8x32xf32>, vector<32x256xf32>, vector<8x256xf32> -> vector<8x256xf32>
    %218 = arith.addf %216, %217 : vector<8x256xf32>
    %219 = arith.negf %218 : vector<8x256xf32>
    %220 = math.exp %219 : vector<8x256xf32>
    %cst_50 = arith.constant 1.000000e+00 : f32
    %221 = vector.broadcast %cst_50 : f32 to vector<8x256xf32>
    %222 = arith.addf %221, %220 : vector<8x256xf32>
    %223 = arith.divf %221, %222 : vector<8x256xf32>
    %224 = vector.extract_strided_slice %223 {offsets = [0, 0], sizes = [8, 32], strides = [1, 1]} : vector<8x256xf32> to vector<8x32xf32>
    %225 = vector.extract_strided_slice %223 {offsets = [0, 32], sizes = [8, 32], strides = [1, 1]} : vector<8x256xf32> to vector<8x32xf32>
    %226 = vector.extract_strided_slice %223 {offsets = [0, 64], sizes = [8, 32], strides = [1, 1]} : vector<8x256xf32> to vector<8x32xf32>
    %cst_51 = arith.constant 2.000000e+00 : f32
    %227 = vector.broadcast %cst_51 : f32 to vector<8x32xf32>
    %228 = arith.mulf %227, %226 : vector<8x32xf32>
    %cst_52 = arith.constant 1.000000e+00 : f32
    %229 = vector.broadcast %cst_52 : f32 to vector<8x32xf32>
    %230 = arith.subf %228, %229 : vector<8x32xf32>
    %231 = vector.extract_strided_slice %223 {offsets = [0, 96], sizes = [8, 32], strides = [1, 1]} : vector<8x256xf32> to vector<8x32xf32>
    %232 = arith.mulf %225, %197 : vector<8x32xf32>
    %233 = arith.mulf %224, %230 : vector<8x32xf32>
    %234 = arith.addf %232, %233 : vector<8x32xf32>
    %235 = math.tanh %234 : vector<8x32xf32>
    %236 = arith.mulf %231, %235 : vector<8x32xf32>
    %237 = vector.extract_strided_slice %223 {offsets = [0, 128], sizes = [8, 32], strides = [1, 1]} : vector<8x256xf32> to vector<8x32xf32>
    %238 = vector.extract_strided_slice %223 {offsets = [0, 160], sizes = [8, 32], strides = [1, 1]} : vector<8x256xf32> to vector<8x32xf32>
    %239 = vector.extract_strided_slice %223 {offsets = [0, 192], sizes = [8, 32], strides = [1, 1]} : vector<8x256xf32> to vector<8x32xf32>
    %cst_53 = arith.constant 2.000000e+00 : f32
    %240 = vector.broadcast %cst_53 : f32 to vector<8x32xf32>
    %241 = arith.mulf %240, %239 : vector<8x32xf32>
    %cst_54 = arith.constant 1.000000e+00 : f32
    %242 = vector.broadcast %cst_54 : f32 to vector<8x32xf32>
    %243 = arith.subf %241, %242 : vector<8x32xf32>
    %244 = vector.extract_strided_slice %223 {offsets = [0, 224], sizes = [8, 32], strides = [1, 1]} : vector<8x256xf32> to vector<8x32xf32>
    %245 = arith.mulf %238, %210 : vector<8x32xf32>
    %246 = arith.mulf %237, %243 : vector<8x32xf32>
    %247 = arith.addf %245, %246 : vector<8x32xf32>
    %248 = math.tanh %247 : vector<8x32xf32>
    %249 = arith.mulf %244, %248 : vector<8x32xf32>
    %250 = vector.extract_strided_slice %2 {offsets = [56, 0], sizes = [8, 256], strides = [1, 1]} : vector<64x256xf32> to vector<8x256xf32>
    %251 = arith.addf %7, %250 : vector<8x256xf32>
    %cst_55 = arith.constant dense<0.000000e+00> : vector<8x256xf32>
    %252 = tpu.matmul %236, %3, %cst_55 {dimension_numbers = #tpu.dot_dimension_numbers<[1], [0], [0], [1], [0, 0, 1, 1], [], []>} : vector<8x32xf32>, vector<32x256xf32>, vector<8x256xf32> -> vector<8x256xf32>
    %253 = arith.addf %251, %252 : vector<8x256xf32>
    %cst_56 = arith.constant dense<0.000000e+00> : vector<8x256xf32>
    %254 = tpu.matmul %249, %4, %cst_56 {dimension_numbers = #tpu.dot_dimension_numbers<[1], [0], [0], [1], [0, 0, 1, 1], [], []>} : vector<8x32xf32>, vector<32x256xf32>, vector<8x256xf32> -> vector<8x256xf32>
    %255 = arith.addf %253, %254 : vector<8x256xf32>
    %256 = arith.negf %255 : vector<8x256xf32>
    %257 = math.exp %256 : vector<8x256xf32>
    %cst_57 = arith.constant 1.000000e+00 : f32
    %258 = vector.broadcast %cst_57 : f32 to vector<8x256xf32>
    %259 = arith.addf %258, %257 : vector<8x256xf32>
    %260 = arith.divf %258, %259 : vector<8x256xf32>
    %261 = vector.extract_strided_slice %260 {offsets = [0, 0], sizes = [8, 32], strides = [1, 1]} : vector<8x256xf32> to vector<8x32xf32>
    %262 = vector.extract_strided_slice %260 {offsets = [0, 32], sizes = [8, 32], strides = [1, 1]} : vector<8x256xf32> to vector<8x32xf32>
    %263 = vector.extract_strided_slice %260 {offsets = [0, 64], sizes = [8, 32], strides = [1, 1]} : vector<8x256xf32> to vector<8x32xf32>
    %cst_58 = arith.constant 2.000000e+00 : f32
    %264 = vector.broadcast %cst_58 : f32 to vector<8x32xf32>
    %265 = arith.mulf %264, %263 : vector<8x32xf32>
    %cst_59 = arith.constant 1.000000e+00 : f32
    %266 = vector.broadcast %cst_59 : f32 to vector<8x32xf32>
    %267 = arith.subf %265, %266 : vector<8x32xf32>
    %268 = vector.extract_strided_slice %260 {offsets = [0, 96], sizes = [8, 32], strides = [1, 1]} : vector<8x256xf32> to vector<8x32xf32>
    %269 = arith.mulf %262, %234 : vector<8x32xf32>
    %270 = arith.mulf %261, %267 : vector<8x32xf32>
    %271 = arith.addf %269, %270 : vector<8x32xf32>
    %272 = math.tanh %271 : vector<8x32xf32>
    %273 = arith.mulf %268, %272 : vector<8x32xf32>
    %274 = vector.extract_strided_slice %260 {offsets = [0, 128], sizes = [8, 32], strides = [1, 1]} : vector<8x256xf32> to vector<8x32xf32>
    %275 = vector.extract_strided_slice %260 {offsets = [0, 160], sizes = [8, 32], strides = [1, 1]} : vector<8x256xf32> to vector<8x32xf32>
    %276 = vector.extract_strided_slice %260 {offsets = [0, 192], sizes = [8, 32], strides = [1, 1]} : vector<8x256xf32> to vector<8x32xf32>
    %cst_60 = arith.constant 2.000000e+00 : f32
    %277 = vector.broadcast %cst_60 : f32 to vector<8x32xf32>
    %278 = arith.mulf %277, %276 : vector<8x32xf32>
    %cst_61 = arith.constant 1.000000e+00 : f32
    %279 = vector.broadcast %cst_61 : f32 to vector<8x32xf32>
    %280 = arith.subf %278, %279 : vector<8x32xf32>
    %281 = vector.extract_strided_slice %260 {offsets = [0, 224], sizes = [8, 32], strides = [1, 1]} : vector<8x256xf32> to vector<8x32xf32>
    %282 = arith.mulf %275, %247 : vector<8x32xf32>
    %283 = arith.mulf %274, %280 : vector<8x32xf32>
    %284 = arith.addf %282, %283 : vector<8x32xf32>
    %285 = math.tanh %284 : vector<8x32xf32>
    %286 = arith.mulf %281, %285 : vector<8x32xf32>
    %cst_62 = arith.constant dense<0.000000e+00> : vector<8x256xf32>
    %287 = tpu.matmul %273, %3, %cst_62 {dimension_numbers = #tpu.dot_dimension_numbers<[1], [0], [0], [1], [0, 0, 1, 1], [], []>} : vector<8x32xf32>, vector<32x256xf32>, vector<8x256xf32> -> vector<8x256xf32>
    %288 = arith.addf %7, %287 : vector<8x256xf32>
    %cst_63 = arith.constant dense<0.000000e+00> : vector<8x256xf32>
    %289 = tpu.matmul %286, %4, %cst_63 {dimension_numbers = #tpu.dot_dimension_numbers<[1], [0], [0], [1], [0, 0, 1, 1], [], []>} : vector<8x32xf32>, vector<32x256xf32>, vector<8x256xf32> -> vector<8x256xf32>
    %290 = arith.addf %288, %289 : vector<8x256xf32>
    %291 = arith.negf %290 : vector<8x256xf32>
    %292 = math.exp %291 : vector<8x256xf32>
    %cst_64 = arith.constant 1.000000e+00 : f32
    %293 = vector.broadcast %cst_64 : f32 to vector<8x256xf32>
    %294 = arith.addf %293, %292 : vector<8x256xf32>
    %295 = arith.divf %293, %294 : vector<8x256xf32>
    %296 = vector.extract_strided_slice %295 {offsets = [0, 128], sizes = [8, 32], strides = [1, 1]} : vector<8x256xf32> to vector<8x32xf32>
    %297 = vector.extract_strided_slice %295 {offsets = [0, 160], sizes = [8, 32], strides = [1, 1]} : vector<8x256xf32> to vector<8x32xf32>
    %298 = vector.extract_strided_slice %295 {offsets = [0, 192], sizes = [8, 32], strides = [1, 1]} : vector<8x256xf32> to vector<8x32xf32>
    %cst_65 = arith.constant 2.000000e+00 : f32
    %299 = vector.broadcast %cst_65 : f32 to vector<8x32xf32>
    %300 = arith.mulf %299, %298 : vector<8x32xf32>
    %cst_66 = arith.constant 1.000000e+00 : f32
    %301 = vector.broadcast %cst_66 : f32 to vector<8x32xf32>
    %302 = arith.subf %300, %301 : vector<8x32xf32>
    %303 = vector.extract_strided_slice %295 {offsets = [0, 224], sizes = [8, 32], strides = [1, 1]} : vector<8x256xf32> to vector<8x32xf32>
    %304 = arith.mulf %297, %284 : vector<8x32xf32>
    %305 = arith.mulf %296, %302 : vector<8x32xf32>
    %306 = arith.addf %304, %305 : vector<8x32xf32>
    %307 = math.tanh %306 : vector<8x32xf32>
    %308 = arith.mulf %303, %307 : vector<8x32xf32>
    %309 = tpu.concatenate %64, %101, %138, %175, %212, %249, %286, %308 in 0 : vector<8x32xf32>, vector<8x32xf32>, vector<8x32xf32>, vector<8x32xf32>, vector<8x32xf32>, vector<8x32xf32>, vector<8x32xf32>, vector<8x32xf32> -> vector<64x32xf32>
    %c0_67 = arith.constant 0 : index
    %c0_68 = arith.constant 0 : index
    %310 = vector.load %arg5[%c0_67, %c0_68] : memref<32x8xf32, #tpu.memory_space<vmem>>, vector<32x8xf32>
    %cst_69 = arith.constant dense<0.000000e+00> : vector<64x8xf32>
    %311 = tpu.matmul %309, %310, %cst_69 {dimension_numbers = #tpu.dot_dimension_numbers<[1], [0], [0], [1], [0, 0, 1, 1], [], []>} : vector<64x32xf32>, vector<32x8xf32>, vector<64x8xf32> -> vector<64x8xf32>
    %c0_70 = arith.constant 0 : index
    %c0_71 = arith.constant 0 : index
    %312 = vector.load %arg6[%c0_70, %c0_71] : memref<1x8xf32, #tpu.memory_space<vmem>>, vector<1x8xf32>
    %313 = vector.broadcast %312 : vector<1x8xf32> to vector<64x8xf32>
    %314 = arith.addf %311, %313 : vector<64x8xf32>
    %cst_72 = arith.constant dense<0xFF800000> : vector<64xf32>
    %315 = vector.multi_reduction <maximumf>, %314, %cst_72 [1] : vector<64x8xf32> to vector<64xf32>
    %316 = vector.shape_cast %315 : vector<64xf32> to vector<64x1xf32>
    %317 = vector.broadcast %316 : vector<64x1xf32> to vector<64x8xf32>
    %318 = arith.subf %314, %317 : vector<64x8xf32>
    %319 = math.exp %318 : vector<64x8xf32>
    %cst_73 = arith.constant dense<0.000000e+00> : vector<64xf32>
    %320 = vector.multi_reduction <add>, %319, %cst_73 [1] : vector<64x8xf32> to vector<64xf32>
    %321 = vector.shape_cast %320 : vector<64xf32> to vector<64x1xf32>
    %322 = tpu.reciprocal %321 : vector<64x1xf32> -> vector<64x1xf32>
    %323 = vector.broadcast %322 : vector<64x1xf32> to vector<64x8xf32>
    %324 = arith.mulf %319, %323 : vector<64x8xf32>
    %c0_74 = arith.constant 0 : index
    %c0_75 = arith.constant 0 : index
    %325 = vector.load %arg7[%c0_74, %c0_75] : memref<64x8xf32, #tpu.memory_space<vmem>>, vector<64x8xf32>
    tpu.vector_store %arg7[%c0_74, %c0_75], %324 {strides = array<i32>} : memref<64x8xf32, #tpu.memory_space<vmem>>, vector<64x8xf32>,
    return
  }
}

</mosaic_0001>

<llo_original>
// kernel: lstm_model_forward.1
$region0: #{lstm_model_forward.1}
  #allocation0 [shape = 'u32[]', space=smem, size = 0x4, offset = 0x4, fixed_abs, tag = 'smem constant byte address 0x4 - core index']
  #allocation1 [shape = 'u32[144,128]{1,0:T(1,128)}', space=vmem, size = 0x12000, scoped, tag = 'internal scratch']
  %s0 = inlined_call_operand.vmem [shape: f32[64,16], index: 0, kind: input, shape index: {}]
  %s1 = inlined_call_operand.vmem [shape: f32[16,256], index: 1, kind: input, shape index: {}]
  %s2 = inlined_call_operand.vmem [shape: f32[32,256], index: 2, kind: input, shape index: {}]
  %s3 = inlined_call_operand.vmem [shape: f32[32,256], index: 3, kind: input, shape index: {}]
  %s4 = inlined_call_operand.vmem [shape: f32[1,256], index: 4, kind: input, shape index: {}]
  %s5 = inlined_call_operand.vmem [shape: f32[32,8], index: 5, kind: input, shape index: {}]
  %s6 = inlined_call_operand.vmem [shape: f32[1,8], index: 6, kind: input, shape index: {}]
  %s7 = inlined_call_operand.vmem [shape: f32[64,8], index: 7, kind: output, shape index: {}]
  %s8 = sld [smem:[#allocation0]]
  $region38: #{lstm_model_forward.1} parent=0
    _
  %s10 = ssub.s32 1, %s8
  %s11 = scalar_select 0, %s10, %s8
  // Predicated region
  $region2: #{lstm_model_forward.1} parent=0 // pred_check
    _
  $region3: #{lstm_model_forward.1} parent=0 // pred_check_branch
    %13 = sbr.rel (0) target = $region5
  $region4: #{lstm_model_forward.1} parent=0 // pred_region
    _
  $region5: #{lstm_model_forward.1} parent=0 // pred_fallthru
    _
  // Predicated region
  $region6: #{lstm_model_forward.1} parent=0 // pred_check
    _
  $region7: #{lstm_model_forward.1} parent=0 // pred_check_branch
    %15 = sbr.rel (0) target = $region9
  $region8: #{lstm_model_forward.1} parent=0 // pred_region
    _
  $region9: #{lstm_model_forward.1} parent=0 // pred_fallthru
    _
  // Predicated region
  $region10: #{lstm_model_forward.1} parent=0 // pred_check
    _
  $region11: #{lstm_model_forward.1} parent=0 // pred_check_branch
    %17 = sbr.rel (0) target = $region13
  $region12: #{lstm_model_forward.1} parent=0 // pred_region
    _
  $region13: #{lstm_model_forward.1} parent=0 // pred_fallthru
    _
  // Predicated region
  $region14: #{lstm_model_forward.1} parent=0 // pred_check
    _
  $region15: #{lstm_model_forward.1} parent=0 // pred_check_branch
    %19 = sbr.rel (0) target = $region17
  $region16: #{lstm_model_forward.1} parent=0 // pred_region
    _
  $region17: #{lstm_model_forward.1} parent=0 // pred_fallthru
    _
  // Predicated region
  $region18: #{lstm_model_forward.1} parent=0 // pred_check
    _
  $region19: #{lstm_model_forward.1} parent=0 // pred_check_branch
    %21 = sbr.rel (0) target = $region21
  $region20: #{lstm_model_forward.1} parent=0 // pred_region
    _
  $region21: #{lstm_model_forward.1} parent=0 // pred_fallthru
    _
  // Predicated region
  $region22: #{lstm_model_forward.1} parent=0 // pred_check
    _
  $region23: #{lstm_model_forward.1} parent=0 // pred_check_branch
    %23 = sbr.rel (0) target = $region25
  $region24: #{lstm_model_forward.1} parent=0 // pred_region
    _
  $region25: #{lstm_model_forward.1} parent=0 // pred_fallthru
    _
  // Predicated region
  $region26: #{lstm_model_forward.1} parent=0 // pred_check
    _
  $region27: #{lstm_model_forward.1} parent=0 // pred_check_branch
    %25 = sbr.rel (0) target = $region29
  $region28: #{lstm_model_forward.1} parent=0 // pred_region
    _
  $region29: #{lstm_model_forward.1} parent=0 // pred_fallthru
    _
  %v26 = vld [vmem:[%s0] sm:$0xff]
  %v27 = vld [vmem:[%s0 + $0x8] sm:$0xff]
  %v28 = vld [vmem:[%s0 + $0x10] sm:$0xff]
  %v29 = vld [vmem:[%s0 + $0x18] sm:$0xff]
  %v30 = vld [vmem:[%s0 + $0x20] sm:$0xff]
  %v31 = vld [vmem:[%s0 + $0x28] sm:$0xff]
  %v32 = vld [vmem:[%s0 + $0x30] sm:$0xff]
  %v33 = vld [vmem:[%s0 + $0x38] sm:$0xff]
  %v34 = vld [vmem:[%s1] sm:$0xff]
  %v35 = vld [vmem:[%s1 + $0x8] sm:$0xff]
  %v36 = vld [vmem:[%s1 + $0x10] sm:$0xff]
  %v37 = vld [vmem:[%s1 + $0x18] sm:$0xff]
  %vm38 = vcmask 130048
  %v40 = vsel %vm38, %v26, 0
  %v43 = vsel %vm38, %v27, 0
  %v46 = vsel %vm38, %v28, 0
  %v49 = vsel %vm38, %v29, 0
  %v52 = vsel %vm38, %v30, 0
  %v55 = vsel %vm38, %v31, 0
  %v58 = vsel %vm38, %v32, 0
  %v61 = vsel %vm38, %v33, 0
  %63 = vmatprep.subr.mxu0 %v35
  %64 = vmatpush1.msra.mxu0 %v34
  %65 = vmatprep.subr.mxu0 %v37
  %66 = vmatpush1.msra.mxu0 %v36
  %67 = vmatprep.subr.mxu0 0.0
  %68 = vmatpush1.msra.mxu0 0.0
  %69 = vmatprep.subr.mxu0 0.0
  %70 = vmatpush1.msra.mxu0 0.0
  %71 = vmatprep.subr.mxu0 0.0
  %72 = vmatpush1.msra.mxu0 0.0
  %73 = vmatprep.subr.mxu0 0.0
  %74 = vmatpush1.msra.mxu0 0.0
  %75 = vmatprep.subr.mxu0 0.0
  %76 = vmatpush1.msra.mxu0 0.0
  %77 = vmatprep.subr.mxu0 0.0
  %78 = vmatpush1.msra.mxu0 0.0
  %79 = vmatprep.subr.mxu0 0.0
  %80 = vmatpush1.msra.mxu0 0.0
  %81 = vmatprep.subr.mxu0 0.0
  %82 = vmatpush1.msra.mxu0 0.0
  %83 = vmatprep.subr.mxu0 0.0
  %84 = vmatpush1.msra.mxu0 0.0
  %85 = vmatprep.subr.mxu0 0.0
  %86 = vmatpush1.msra.mxu0 0.0
  %87 = vmatprep.subr.mxu0 0.0
  %88 = vmatpush1.msra.mxu0 0.0
  %89 = vmatprep.subr.mxu0 0.0
  %90 = vmatpush1.msra.mxu0 0.0
  %91 = vmatprep.subr.mxu0 0.0
  %92 = vmatpush1.msra.mxu0 0.0
  %93 = vmatprep.subr.mxu0 0.0
  %94 = vmatpush1.msra.mxu0 0.0
  %95 = vmatprep.subr.mxu0 0.0
  %96 = vmatpush1.msra.mxu0 0.0
  %97 = vmatprep.subr.mxu0 0.0
  %98 = vmatpush1.msra.mxu0 0.0
  %99 = vmatprep.subr.mxu0 0.0
  %100 = vmatpush1.msra.mxu0 0.0
  %101 = vmatprep.subr.mxu0 0.0
  %102 = vmatpush1.msra.mxu0 0.0
  %103 = vmatprep.subr.mxu0 0.0
  %104 = vmatpush1.msra.mxu0 0.0
  %105 = vmatprep.subr.mxu0 0.0
  %106 = vmatpush1.msra.mxu0 0.0
  %107 = vmatprep.subr.mxu0 0.0
  %108 = vmatpush1.msra.mxu0 0.0
  %109 = vmatprep.subr.mxu0 0.0
  %110 = vmatpush1.msra.mxu0 0.0
  %111 = vmatprep.subr.mxu0 0.0
  %112 = vmatpush1.msra.mxu0 0.0
  %113 = vmatprep.subr.mxu0 0.0
  %114 = vmatpush1.msra.mxu0 0.0
  %115 = vmatprep.subr.mxu0 0.0
  %116 = vmatpush1.msra.mxu0 0.0
  %117 = vmatprep.subr.mxu0 0.0
  %118 = vmatpush1.msra.mxu0 0.0
  %119 = vmatprep.subr.mxu0 0.0
  %120 = vmatpush1.msra.mxu0 0.0
  %121 = vmatprep.subr.mxu0 0.0
  %122 = vmatpush1.msra.mxu0 0.0
  %123 = vmatprep.subr.mxu0 0.0
  %124 = vmatpush1.msra.mxu0 0.0
  %125 = vmatprep.subr.mxu0 0.0
  %126 = vmatpush1.msra.mxu0 0.0
  %127 = vmatprep.mubr.f32.mxu0 0.0
  %128 = vmatmul.mubr.f32.gmra.mrb[0].mxu0 %v40
  %v129 = vpop.f32.mrb[0].mxu0
  %v130 = vadd.f32 0.0, %v129
  %v131 = vpop.f32.mrb[0].mxu0
  %132 = vmatprep.mubr.f32.mxu0 0.0
  %133 = vmatmul.mubr.f32.gmra.mrb[0].mxu0 %v43
  %v134 = vpop.f32.mrb[0].mxu0
  %v135 = vadd.f32 0.0, %v134
  %v136 = vpop.f32.mrb[0].mxu0
  %v137 = vadd.f32 0.0, %v136
  %138 = vmatprep.mubr.f32.mxu0 0.0
  %139 = vmatmul.mubr.f32.gmra.mrb[0].mxu0 %v46
  %v140 = vpop.f32.mrb[0].mxu0
  %v141 = vadd.f32 0.0, %v140
  %v142 = vpop.f32.mrb[0].mxu0
  %v143 = vadd.f32 0.0, %v142
  %144 = vmatprep.mubr.f32.mxu0 0.0
  %145 = vmatmul.mubr.f32.gmra.mrb[0].mxu0 %v49
  %v146 = vpop.f32.mrb[0].mxu0
  %v147 = vadd.f32 0.0, %v146
  %v148 = vpop.f32.mrb[0].mxu0
  %v149 = vadd.f32 0.0, %v148
  %150 = vmatprep.mubr.f32.mxu0 0.0
  %151 = vmatmul.mubr.f32.gmra.mrb[0].mxu0 %v52
  %v152 = vpop.f32.mrb[0].mxu0
  %v153 = vadd.f32 0.0, %v152
  %v154 = vpop.f32.mrb[0].mxu0
  %v155 = vadd.f32 0.0, %v154
  %156 = vmatprep.mubr.f32.mxu0 0.0
  %157 = vmatmul.mubr.f32.gmra.mrb[0].mxu0 %v55
  %v158 = vpop.f32.mrb[0].mxu0
  %v159 = vadd.f32 0.0, %v158
  %v160 = vpop.f32.mrb[0].mxu0
  %v161 = vadd.f32 0.0, %v160
  %162 = vmatprep.mubr.f32.mxu0 0.0
  %163 = vmatmul.mubr.f32.gmra.mrb[0].mxu0 %v58
  %v164 = vpop.f32.mrb[0].mxu0
  %v165 = vadd.f32 0.0, %v164
  %v166 = vpop.f32.mrb[0].mxu0
  %v167 = vadd.f32 0.0, %v166
  %168 = vmatprep.mubr.f32.mxu0 0.0
  %169 = vmatmul.mubr.f32.gmra.mrb[0].mxu0 %v61
  %v170 = vpop.f32.mrb[0].mxu0
  %v171 = vadd.f32 0.0, %v170
  %v172 = vpop.f32.mrb[0].mxu0
  %v173 = vadd.f32 0.0, %v172
  %174 = vdwg.mxu0
  %v175 = vld [vmem:[%s2] sm:$0xff]
  %v176 = vld [vmem:[%s2 + $0x8] sm:$0xff]
  %v177 = vld [vmem:[%s2 + $0x10] sm:$0xff]
  %v178 = vld [vmem:[%s2 + $0x18] sm:$0xff]
  %v179 = vld [vmem:[%s2 + $0x20] sm:$0xff]
  %v180 = vld [vmem:[%s2 + $0x28] sm:$0xff]
  %v181 = vld [vmem:[%s2 + $0x30] sm:$0xff]
  %v182 = vld [vmem:[%s2 + $0x38] sm:$0xff]
  %v183 = vld [vmem:[%s3] sm:$0xff]
  %v184 = vld [vmem:[%s3 + $0x8] sm:$0xff]
  %v185 = vld [vmem:[%s3 + $0x10] sm:$0xff]
  %v186 = vld [vmem:[%s3 + $0x18] sm:$0xff]
  %v187 = vld [vmem:[%s3 + $0x20] sm:$0xff]
  %v188 = vld [vmem:[%s3 + $0x28] sm:$0xff]
  %v189 = vld [vmem:[%s3 + $0x30] sm:$0xff]
  %v190 = vld [vmem:[%s3 + $0x38] sm:$0xff]
  %v191 = vld [vmem:[%s4] sm:$0x3]
  %v193 = vlaneseq
  %v194 = vshrl.u32 %v193, 7
  %v195 = vsub.s32 0, %v194
  %v196 = vrot.slane %v191, %v195
  %v197 = vlaneseq
  %v198 = vshrl.u32 %v197, 7
  %v199 = vsub.s32 1, %v198
  %v200 = vrot.slane %v191, %v199
  %v203 = vadd.f32 %v196, %v130
  %v204 = vxor.u32 %v203, 2147483648
  %v205 = vmul.f32 %v204, 1.442695
  %v206 = vpow.pop %v205
  %v207 = vadd.f32 %v206, 1.0
  %v208 = vrcp.pop %v207
  %v209 = vmul.f32 1.0, %v208
  %v210 = vmul.f32 %v209, 2.0
  %v211 = vsub.f32 %v210, 1.0
  %v212 = vmul.f32 %v209, 0.0
  %214 = vrot.lane.b32.xlu0 %v211, 64
  %v215 = vpop.permute.xlu0 %214
  %v217 = vmul.f32 %v209, %v215
  %219 = vrot.lane.b32.xlu0 %v217, 32
  %v220 = vpop.permute.xlu0 %219
  %v222 = vadd.f32 %v212, %v220
  %v223 = vtanh.pop %v222
  %225 = vrot.lane.b32.xlu0 %v223, 64
  %v226 = vpop.permute.xlu0 %225
  %v228 = vmul.f32 %v209, %v226
  %v229 = vadd.f32 %v196, %v135
  %v230 = vadd.f32 %v200, %v137
  %232 = vrot.lane.b32.xlu0 %v228, 32
  %v233 = vpop.permute.xlu0 %232
  %vm234 = vcmask 261120
  %v235 = vsel %vm234, %v233, 0
  %237 = vmatprep.subr.mxu0 %v176
  %238 = vmatpush1.msra.mxu0 %v175
  %239 = vmatprep.subr.mxu0 %v178
  %240 = vmatpush1.msra.mxu0 %v177
  %241 = vmatprep.subr.mxu0 %v180
  %242 = vmatpush1.msra.mxu0 %v179
  %243 = vmatprep.subr.mxu0 %v182
  %244 = vmatpush1.msra.mxu0 %v181
  %245 = vmatprep.subr.mxu0 0.0
  %246 = vmatpush1.msra.mxu0 0.0
  %247 = vmatprep.subr.mxu0 0.0
  %248 = vmatpush1.msra.mxu0 0.0
  %249 = vmatprep.subr.mxu0 0.0
  %250 = vmatpush1.msra.mxu0 0.0
  %251 = vmatprep.subr.mxu0 0.0
  %252 = vmatpush1.msra.mxu0 0.0
  %253 = vmatprep.subr.mxu0 0.0
  %254 = vmatpush1.msra.mxu0 0.0
  %255 = vmatprep.subr.mxu0 0.0
  %256 = vmatpush1.msra.mxu0 0.0
  %257 = vmatprep.subr.mxu0 0.0
  %258 = vmatpush1.msra.mxu0 0.0
  %259 = vmatprep.subr.mxu0 0.0
  %260 = vmatpush1.msra.mxu0 0.0
  %261 = vmatprep.subr.mxu0 0.0
  %262 = vmatpush1.msra.mxu0 0.0
  %263 = vmatprep.subr.mxu0 0.0
  %264 = vmatpush1.msra.mxu0 0.0
  %265 = vmatprep.subr.mxu0 0.0
  %266 = vmatpush1.msra.mxu0 0.0
  %267 = vmatprep.subr.mxu0 0.0
  %268 = vmatpush1.msra.mxu0 0.0
  %269 = vmatprep.subr.mxu0 0.0
  %270 = vmatpush1.msra.mxu0 0.0
  %271 = vmatprep.subr.mxu0 0.0
  %272 = vmatpush1.msra.mxu0 0.0
  %273 = vmatprep.subr.mxu0 0.0
  %274 = vmatpush1.msra.mxu0 0.0
  %275 = vmatprep.subr.mxu0 0.0
  %276 = vmatpush1.msra.mxu0 0.0
  %277 = vmatprep.subr.mxu0 0.0
  %278 = vmatpush1.msra.mxu0 0.0
  %279 = vmatprep.subr.mxu0 0.0
  %280 = vmatpush1.msra.mxu0 0.0
  %281 = vmatprep.subr.mxu0 0.0
  %282 = vmatpush1.msra.mxu0 0.0
  %283 = vmatprep.subr.mxu0 0.0
  %284 = vmatpush1.msra.mxu0 0.0
  %285 = vmatprep.subr.mxu0 0.0
  %286 = vmatpush1.msra.mxu0 0.0
  %287 = vmatprep.subr.mxu0 0.0
  %288 = vmatpush1.msra.mxu0 0.0
  %289 = vmatprep.subr.mxu0 0.0
  %290 = vmatpush1.msra.mxu0 0.0
  %291 = vmatprep.subr.mxu0 0.0
  %292 = vmatpush1.msra.mxu0 0.0
  %293 = vmatprep.subr.mxu0 0.0
  %294 = vmatpush1.msra.mxu0 0.0
  %295 = vmatprep.subr.mxu0 0.0
  %296 = vmatpush1.msra.mxu0 0.0
  %297 = vmatprep.subr.mxu0 0.0
  %298 = vmatpush1.msra.mxu0 0.0
  %299 = vmatprep.subr.mxu0 0.0
  %300 = vmatpush1.msra.mxu0 0.0
  %301 = vmatprep.mubr.f32.mxu0 0.0
  %302 = vmatmul.mubr.f32.gmra.mrb[0].mxu0 %v235
  %v303 = vpop.f32.mrb[0].mxu0
  %v304 = vadd.f32 0.0, %v303
  %v305 = vpop.f32.mrb[0].mxu0
  %v306 = vadd.f32 0.0, %v305
  %307 = vdwg.mxu0
  %v308 = vadd.f32 %v229, %v304
  %v309 = vadd.f32 %v230, %v306
  %v310 = vxor.u32 %v308, 2147483648
  %v311 = vxor.u32 %v309, 2147483648
  %v312 = vmul.f32 %v310, 1.442695
  %v313 = vpow.pop %v312
  %v314 = vmul.f32 %v311, 1.442695
  %v315 = vpow.pop %v314
  %v316 = vadd.f32 %v313, 1.0
  %v317 = vadd.f32 %v315, 1.0
  %v318 = vrcp.pop %v316
  %v319 = vmul.f32 1.0, %v318
  %v320 = vrcp.pop %v317
  %v321 = vmul.f32 1.0, %v320
  %v322 = vmul.f32 %v319, 2.0
  %v323 = vsub.f32 %v322, 1.0
  %v324 = vmul.f32 %v319, %v222
  %326 = vrot.lane.b32.xlu0 %v323, 64
  %v327 = vpop.permute.xlu0 %326
  %v329 = vmul.f32 %v319, %v327
  %331 = vrot.lane.b32.xlu0 %v329, 32
  %v332 = vpop.permute.xlu0 %331
  %v334 = vadd.f32 %v324, %v332
  %v335 = vtanh.pop %v334
  %337 = vrot.lane.b32.xlu0 %v335, 64
  %v338 = vpop.permute.xlu0 %337
  %v340 = vmul.f32 %v319, %v338
  %v341 = vmul.f32 %v321, 2.0
  %v342 = vsub.f32 %v341, 1.0
  %v343 = vmul.f32 %v321, 0.0
  %345 = vrot.lane.b32.xlu0 %v342, 64
  %v346 = vpop.permute.xlu0 %345
  %v348 = vmul.f32 %v321, %v346
  %350 = vrot.lane.b32.xlu0 %v348, 32
  %v351 = vpop.permute.xlu0 %350
  %v353 = vadd.f32 %v343, %v351
  %v354 = vtanh.pop %v353
  %356 = vrot.lane.b32.xlu0 %v354, 64
  %v357 = vpop.permute.xlu0 %356
  %v359 = vmul.f32 %v321, %v357
  %v360 = vadd.f32 %v196, %v141
  %v361 = vadd.f32 %v200, %v143
  %363 = vrot.lane.b32.xlu0 %v340, 32
  %v364 = vpop.permute.xlu0 %363
  %v365 = vsel %vm234, %v364, 0
  %367 = vmatprep.subr.mxu0 %v176
  %368 = vmatpush1.msra.mxu0 %v175
  %369 = vmatprep.subr.mxu0 %v178
  %370 = vmatpush1.msra.mxu0 %v177
  %371 = vmatprep.subr.mxu0 %v180
  %372 = vmatpush1.msra.mxu0 %v179
  %373 = vmatprep.subr.mxu0 %v182
  %374 = vmatpush1.msra.mxu0 %v181
  %375 = vmatprep.subr.mxu0 0.0
  %376 = vmatpush1.msra.mxu0 0.0
  %377 = vmatprep.subr.mxu0 0.0
  %378 = vmatpush1.msra.mxu0 0.0
  %379 = vmatprep.subr.mxu0 0.0
  %380 = vmatpush1.msra.mxu0 0.0
  %381 = vmatprep.subr.mxu0 0.0
  %382 = vmatpush1.msra.mxu0 0.0
  %383 = vmatprep.subr.mxu0 0.0
  %384 = vmatpush1.msra.mxu0 0.0
  %385 = vmatprep.subr.mxu0 0.0
  %386 = vmatpush1.msra.mxu0 0.0
  %387 = vmatprep.subr.mxu0 0.0
  %388 = vmatpush1.msra.mxu0 0.0
  %389 = vmatprep.subr.mxu0 0.0
  %390 = vmatpush1.msra.mxu0 0.0
  %391 = vmatprep.subr.mxu0 0.0
  %392 = vmatpush1.msra.mxu0 0.0
  %393 = vmatprep.subr.mxu0 0.0
  %394 = vmatpush1.msra.mxu0 0.0
  %395 = vmatprep.subr.mxu0 0.0
  %396 = vmatpush1.msra.mxu0 0.0
  %397 = vmatprep.subr.mxu0 0.0
  %398 = vmatpush1.msra.mxu0 0.0
  %399 = vmatprep.subr.mxu0 0.0
  %400 = vmatpush1.msra.mxu0 0.0
  %401 = vmatprep.subr.mxu0 0.0
  %402 = vmatpush1.msra.mxu0 0.0
  %403 = vmatprep.subr.mxu0 0.0
  %404 = vmatpush1.msra.mxu0 0.0
  %405 = vmatprep.subr.mxu0 0.0
  %406 = vmatpush1.msra.mxu0 0.0
  %407 = vmatprep.subr.mxu0 0.0
  %408 = vmatpush1.msra.mxu0 0.0
  %409 = vmatprep.subr.mxu0 0.0
  %410 = vmatpush1.msra.mxu0 0.0
  %411 = vmatprep.subr.mxu0 0.0
  %412 = vmatpush1.msra.mxu0 0.0
  %413 = vmatprep.subr.mxu0 0.0
  %414 = vmatpush1.msra.mxu0 0.0
  %415 = vmatprep.subr.mxu0 0.0
  %416 = vmatpush1.msra.mxu0 0.0
  %417 = vmatprep.subr.mxu0 0.0
  %418 = vmatpush1.msra.mxu0 0.0
  %419 = vmatprep.subr.mxu0 0.0
  %420 = vmatpush1.msra.mxu0 0.0
  %421 = vmatprep.subr.mxu0 0.0
  %422 = vmatpush1.msra.mxu0 0.0
  %423 = vmatprep.subr.mxu0 0.0
  %424 = vmatpush1.msra.mxu0 0.0
  %425 = vmatprep.subr.mxu0 0.0
  %426 = vmatpush1.msra.mxu0 0.0
  %427 = vmatprep.subr.mxu0 0.0
  %428 = vmatpush1.msra.mxu0 0.0
  %429 = vmatprep.subr.mxu0 0.0
  %430 = vmatpush1.msra.mxu0 0.0
  %431 = vmatprep.mubr.f32.mxu0 0.0
  %432 = vmatmul.mubr.f32.gmra.mrb[0].mxu0 %v365
  %v433 = vpop.f32.mrb[0].mxu0
  %v434 = vadd.f32 0.0, %v433
  %v435 = vpop.f32.mrb[0].mxu0
  %v436 = vadd.f32 0.0, %v435
  %437 = vdwg.mxu0
  %v438 = vadd.f32 %v360, %v434
  %v439 = vadd.f32 %v361, %v436
  %441 = vrot.lane.b32.xlu0 %v359, 32
  %v442 = vpop.permute.xlu0 %441
  %v443 = vsel %vm234, %v442, 0
  %445 = vmatprep.subr.mxu0 %v184
  %446 = vmatpush1.msra.mxu0 %v183
  %447 = vmatprep.subr.mxu0 %v186
  %448 = vmatpush1.msra.mxu0 %v185
  %449 = vmatprep.subr.mxu0 %v188
  %450 = vmatpush1.msra.mxu0 %v187
  %451 = vmatprep.subr.mxu0 %v190
  %452 = vmatpush1.msra.mxu0 %v189
  %453 = vmatprep.subr.mxu0 0.0
  %454 = vmatpush1.msra.mxu0 0.0
  %455 = vmatprep.subr.mxu0 0.0
  %456 = vmatpush1.msra.mxu0 0.0
  %457 = vmatprep.subr.mxu0 0.0
  %458 = vmatpush1.msra.mxu0 0.0
  %459 = vmatprep.subr.mxu0 0.0
  %460 = vmatpush1.msra.mxu0 0.0
  %461 = vmatprep.subr.mxu0 0.0
  %462 = vmatpush1.msra.mxu0 0.0
  %463 = vmatprep.subr.mxu0 0.0
  %464 = vmatpush1.msra.mxu0 0.0
  %465 = vmatprep.subr.mxu0 0.0
  %466 = vmatpush1.msra.mxu0 0.0
  %467 = vmatprep.subr.mxu0 0.0
  %468 = vmatpush1.msra.mxu0 0.0
  %469 = vmatprep.subr.mxu0 0.0
  %470 = vmatpush1.msra.mxu0 0.0
  %471 = vmatprep.subr.mxu0 0.0
  %472 = vmatpush1.msra.mxu0 0.0
  %473 = vmatprep.subr.mxu0 0.0
  %474 = vmatpush1.msra.mxu0 0.0
  %475 = vmatprep.subr.mxu0 0.0
  %476 = vmatpush1.msra.mxu0 0.0
  %477 = vmatprep.subr.mxu0 0.0
  %478 = vmatpush1.msra.mxu0 0.0
  %479 = vmatprep.subr.mxu0 0.0
  %480 = vmatpush1.msra.mxu0 0.0
  %481 = vmatprep.subr.mxu0 0.0
  %482 = vmatpush1.msra.mxu0 0.0
  %483 = vmatprep.subr.mxu0 0.0
  %484 = vmatpush1.msra.mxu0 0.0
  %485 = vmatprep.subr.mxu0 0.0
  %486 = vmatpush1.msra.mxu0 0.0
  %487 = vmatprep.subr.mxu0 0.0
  %488 = vmatpush1.msra.mxu0 0.0
  %489 = vmatprep.subr.mxu0 0.0
  %490 = vmatpush1.msra.mxu0 0.0
  %491 = vmatprep.subr.mxu0 0.0
  %492 = vmatpush1.msra.mxu0 0.0
  %493 = vmatprep.subr.mxu0 0.0
  %494 = vmatpush1.msra.mxu0 0.0
  %495 = vmatprep.subr.mxu0 0.0
  %496 = vmatpush1.msra.mxu0 0.0
  %497 = vmatprep.subr.mxu0 0.0
  %498 = vmatpush1.msra.mxu0 0.0
  %499 = vmatprep.subr.mxu0 0.0
  %500 = vmatpush1.msra.mxu0 0.0
  %501 = vmatprep.subr.mxu0 0.0
  %502 = vmatpush1.msra.mxu0 0.0
  %503 = vmatprep.subr.mxu0 0.0
  %504 = vmatpush1.msra.mxu0 0.0
  %505 = vmatprep.subr.mxu0 0.0
  %506 = vmatpush1.msra.mxu0 0.0
  %507 = vmatprep.subr.mxu0 0.0
  %508 = vmatpush1.msra.mxu0 0.0
  %509 = vmatprep.mubr.f32.mxu0 0.0
  %510 = vmatmul.mubr.f32.gmra.mrb[0].mxu0 %v443
  %v511 = vpop.f32.mrb[0].mxu0
  %v512 = vadd.f32 0.0, %v511
  %v513 = vpop.f32.mrb[0].mxu0
  %v514 = vadd.f32 0.0, %v513
  %515 = vdwg.mxu0
  %v516 = vadd.f32 %v438, %v512
  %v517 = vadd.f32 %v439, %v514
  %v518 = vxor.u32 %v516, 2147483648
  %v519 = vxor.u32 %v517, 2147483648
  %v520 = vmul.f32 %v518, 1.442695
  %v521 = vpow.pop %v520
  %v522 = vmul.f32 %v519, 1.442695
  %v523 = vpow.pop %v522
  %v524 = vadd.f32 %v521, 1.0
  %v525 = vadd.f32 %v523, 1.0
  %v526 = vrcp.pop %v524
  %v527 = vmul.f32 1.0, %v526
  %v528 = vrcp.pop %v525
  %v529 = vmul.f32 1.0, %v528
  %v530 = vmul.f32 %v527, 2.0
  %v531 = vsub.f32 %v530, 1.0
  %v532 = vmul.f32 %v527, %v334
  %534 = vrot.lane.b32.xlu0 %v531, 64
  %v535 = vpop.permute.xlu0 %534
  %v537 = vmul.f32 %v527, %v535
  %539 = vrot.lane.b32.xlu0 %v537, 32
  %v540 = vpop.permute.xlu0 %539
  %v542 = vadd.f32 %v532, %v540
  %v543 = vtanh.pop %v542
  %545 = vrot.lane.b32.xlu0 %v543, 64
  %v546 = vpop.permute.xlu0 %545
  %v548 = vmul.f32 %v527, %v546
  %v549 = vmul.f32 %v529, 2.0
  %v550 = vsub.f32 %v549, 1.0
  %v551 = vmul.f32 %v529, %v353
  %553 = vrot.lane.b32.xlu0 %v550, 64
  %v554 = vpop.permute.xlu0 %553
  %v556 = vmul.f32 %v529, %v554
  %558 = vrot.lane.b32.xlu0 %v556, 32
  %v559 = vpop.permute.xlu0 %558
  %v561 = vadd.f32 %v551, %v559
  %v562 = vtanh.pop %v561
  %564 = vrot.lane.b32.xlu0 %v562, 64
  %v565 = vpop.permute.xlu0 %564
  %v567 = vmul.f32 %v529, %v565
  %v568 = vadd.f32 %v196, %v147
  %v569 = vadd.f32 %v200, %v149
  %571 = vrot.lane.b32.xlu0 %v548, 32
  %v572 = vpop.permute.xlu0 %571
  %v573 = vsel %vm234, %v572, 0
  %575 = vmatprep.subr.mxu0 %v176
  %576 = vmatpush1.msra.mxu0 %v175
  %577 = vmatprep.subr.mxu0 %v178
  %578 = vmatpush1.msra.mxu0 %v177
  %579 = vmatprep.subr.mxu0 %v180
  %580 = vmatpush1.msra.mxu0 %v179
  %581 = vmatprep.subr.mxu0 %v182
  %582 = vmatpush1.msra.mxu0 %v181
  %583 = vmatprep.subr.mxu0 0.0
  %584 = vmatpush1.msra.mxu0 0.0
  %585 = vmatprep.subr.mxu0 0.0
  %586 = vmatpush1.msra.mxu0 0.0
  %587 = vmatprep.subr.mxu0 0.0
  %588 = vmatpush1.msra.mxu0 0.0
  %589 = vmatprep.subr.mxu0 0.0
  %590 = vmatpush1.msra.mxu0 0.0
  %591 = vmatprep.subr.mxu0 0.0
  %592 = vmatpush1.msra.mxu0 0.0
  %593 = vmatprep.subr.mxu0 0.0
  %594 = vmatpush1.msra.mxu0 0.0
  %595 = vmatprep.subr.mxu0 0.0
  %596 = vmatpush1.msra.mxu0 0.0
  %597 = vmatprep.subr.mxu0 0.0
  %598 = vmatpush1.msra.mxu0 0.0
  %599 = vmatprep.subr.mxu0 0.0
  %600 = vmatpush1.msra.mxu0 0.0
  %601 = vmatprep.subr.mxu0 0.0
  %602 = vmatpush1.msra.mxu0 0.0
  %603 = vmatprep.subr.mxu0 0.0
  %604 = vmatpush1.msra.mxu0 0.0
  %605 = vmatprep.subr.mxu0 0.0
  %606 = vmatpush1.msra.mxu0 0.0
  %607 = vmatprep.subr.mxu0 0.0
  %608 = vmatpush1.msra.mxu0 0.0
  %609 = vmatprep.subr.mxu0 0.0
  %610 = vmatpush1.msra.mxu0 0.0
  %611 = vmatprep.subr.mxu0 0.0
  %612 = vmatpush1.msra.mxu0 0.0
  %613 = vmatprep.subr.mxu0 0.0
  %614 = vmatpush1.msra.mxu0 0.0
  %615 = vmatprep.subr.mxu0 0.0
  %616 = vmatpush1.msra.mxu0 0.0
  %617 = vmatprep.subr.mxu0 0.0
  %618 = vmatpush1.msra.mxu0 0.0
  %619 = vmatprep.subr.mxu0 0.0
  %620 = vmatpush1.msra.mxu0 0.0
  %621 = vmatprep.subr.mxu0 0.0
  %622 = vmatpush1.msra.mxu0 0.0
  %623 = vmatprep.subr.mxu0 0.0
  %624 = vmatpush1.msra.mxu0 0.0
  %625 = vmatprep.subr.mxu0 0.0
  %626 = vmatpush1.msra.mxu0 0.0
  %627 = vmatprep.subr.mxu0 0.0
  %628 = vmatpush1.msra.mxu0 0.0
  %629 = vmatprep.subr.mxu0 0.0
  %630 = vmatpush1.msra.mxu0 0.0
  %631 = vmatprep.subr.mxu0 0.0
  %632 = vmatpush1.msra.mxu0 0.0
  %633 = vmatprep.subr.mxu0 0.0
  %634 = vmatpush1.msra.mxu0 0.0
  %635 = vmatprep.subr.mxu0 0.0
  %636 = vmatpush1.msra.mxu0 0.0
  %637 = vmatprep.subr.mxu0 0.0
  %638 = vmatpush1.msra.mxu0 0.0
  %639 = vmatprep.mubr.f32.mxu0 0.0
  %640 = vmatmul.mubr.f32.gmra.mrb[0].mxu0 %v573
  %v641 = vpop.f32.mrb[0].mxu0
  %v642 = vadd.f32 0.0, %v641
  %v643 = vpop.f32.mrb[0].mxu0
  %v644 = vadd.f32 0.0, %v643
  %645 = vdwg.mxu0
  %v646 = vadd.f32 %v568, %v642
  %v647 = vadd.f32 %v569, %v644
  %649 = vrot.lane.b32.xlu0 %v567, 32
  %v650 = vpop.permute.xlu0 %649
  %v651 = vsel %vm234, %v650, 0
  %653 = vmatprep.subr.mxu0 %v184
  %654 = vmatpush1.msra.mxu0 %v183
  %655 = vmatprep.subr.mxu0 %v186
  %656 = vmatpush1.msra.mxu0 %v185
  %657 = vmatprep.subr.mxu0 %v188
  %658 = vmatpush1.msra.mxu0 %v187
  %659 = vmatprep.subr.mxu0 %v190
  %660 = vmatpush1.msra.mxu0 %v189
  %661 = vmatprep.subr.mxu0 0.0
  %662 = vmatpush1.msra.mxu0 0.0
  %663 = vmatprep.subr.mxu0 0.0
  %664 = vmatpush1.msra.mxu0 0.0
  %665 = vmatprep.subr.mxu0 0.0
  %666 = vmatpush1.msra.mxu0 0.0
  %667 = vmatprep.subr.mxu0 0.0
  %668 = vmatpush1.msra.mxu0 0.0
  %669 = vmatprep.subr.mxu0 0.0
  %670 = vmatpush1.msra.mxu0 0.0
  %671 = vmatprep.subr.mxu0 0.0
  %672 = vmatpush1.msra.mxu0 0.0
  %673 = vmatprep.subr.mxu0 0.0
  %674 = vmatpush1.msra.mxu0 0.0
  %675 = vmatprep.subr.mxu0 0.0
  %676 = vmatpush1.msra.mxu0 0.0
  %677 = vmatprep.subr.mxu0 0.0
  %678 = vmatpush1.msra.mxu0 0.0
  %679 = vmatprep.subr.mxu0 0.0
  %680 = vmatpush1.msra.mxu0 0.0
  %681 = vmatprep.subr.mxu0 0.0
  %682 = vmatpush1.msra.mxu0 0.0
  %683 = vmatprep.subr.mxu0 0.0
  %684 = vmatpush1.msra.mxu0 0.0
  %685 = vmatprep.subr.mxu0 0.0
  %686 = vmatpush1.msra.mxu0 0.0
  %687 = vmatprep.subr.mxu0 0.0
  %688 = vmatpush1.msra.mxu0 0.0
  %689 = vmatprep.subr.mxu0 0.0
  %690 = vmatpush1.msra.mxu0 0.0
  %691 = vmatprep.subr.mxu0 0.0
  %692 = vmatpush1.msra.mxu0 0.0
  %693 = vmatprep.subr.mxu0 0.0
  %694 = vmatpush1.msra.mxu0 0.0
  %695 = vmatprep.subr.mxu0 0.0
  %696 = vmatpush1.msra.mxu0 0.0
  %697 = vmatprep.subr.mxu0 0.0
  %698 = vmatpush1.msra.mxu0 0.0
  %699 = vmatprep.subr.mxu0 0.0
  %700 = vmatpush1.msra.mxu0 0.0
  %701 = vmatprep.subr.mxu0 0.0
  %702 = vmatpush1.msra.mxu0 0.0
  %703 = vmatprep.subr.mxu0 0.0
  %704 = vmatpush1.msra.mxu0 0.0
  %705 = vmatprep.subr.mxu0 0.0
  %706 = vmatpush1.msra.mxu0 0.0
  %707 = vmatprep.subr.mxu0 0.0
  %708 = vmatpush1.msra.mxu0 0.0
  %709 = vmatprep.subr.mxu0 0.0
  %710 = vmatpush1.msra.mxu0 0.0
  %711 = vmatprep.subr.mxu0 0.0
  %712 = vmatpush1.msra.mxu0 0.0
  %713 = vmatprep.subr.mxu0 0.0
  %714 = vmatpush1.msra.mxu0 0.0
  %715 = vmatprep.subr.mxu0 0.0
  %716 = vmatpush1.msra.mxu0 0.0
  %717 = vmatprep.mubr.f32.mxu0 0.0
  %718 = vmatmul.mubr.f32.gmra.mrb[0].mxu0 %v651
  %v719 = vpop.f32.mrb[0].mxu0
  %v720 = vadd.f32 0.0, %v719
  %v721 = vpop.f32.mrb[0].mxu0
  %v722 = vadd.f32 0.0, %v721
  %723 = vdwg.mxu0
  %v724 = vadd.f32 %v646, %v720
  %v725 = vadd.f32 %v647, %v722
  %v726 = vxor.u32 %v724, 2147483648
  %v727 = vxor.u32 %v725, 2147483648
  %v728 = vmul.f32 %v726, 1.442695
  %v729 = vpow.pop %v728
  %v730 = vmul.f32 %v727, 1.442695
  %v731 = vpow.pop %v730
  %v732 = vadd.f32 %v729, 1.0
  %v733 = vadd.f32 %v731, 1.0
  %v734 = vrcp.pop %v732
  %v735 = vmul.f32 1.0, %v734
  %v736 = vrcp.pop %v733
  %v737 = vmul.f32 1.0, %v736
  %v738 = vmul.f32 %v735, 2.0
  %v739 = vsub.f32 %v738, 1.0
  %v740 = vmul.f32 %v735, %v542
  %742 = vrot.lane.b32.xlu0 %v739, 64
  %v743 = vpop.permute.xlu0 %742
  %v745 = vmul.f32 %v735, %v743
  %747 = vrot.lane.b32.xlu0 %v745, 32
  %v748 = vpop.permute.xlu0 %747
  %v750 = vadd.f32 %v740, %v748
  %v751 = vtanh.pop %v750
  %753 = vrot.lane.b32.xlu0 %v751, 64
  %v754 = vpop.permute.xlu0 %753
  %v756 = vmul.f32 %v735, %v754
  %v757 = vmul.f32 %v737, 2.0
  %v758 = vsub.f32 %v757, 1.0
  %v759 = vmul.f32 %v737, %v561
  %761 = vrot.lane.b32.xlu0 %v758, 64
  %v762 = vpop.permute.xlu0 %761
  %v764 = vmul.f32 %v737, %v762
  %766 = vrot.lane.b32.xlu0 %v764, 32
  %v767 = vpop.permute.xlu0 %766
  %v769 = vadd.f32 %v759, %v767
  %v770 = vtanh.pop %v769
  %772 = vrot.lane.b32.xlu0 %v770, 64
  %v773 = vpop.permute.xlu0 %772
  %v775 = vmul.f32 %v737, %v773
  %v776 = vadd.f32 %v196, %v153
  %v777 = vadd.f32 %v200, %v155
  %779 = vrot.lane.b32.xlu0 %v756, 32
  %v780 = vpop.permute.xlu0 %779
  %v781 = vsel %vm234, %v780, 0
  %783 = vmatprep.subr.mxu0 %v176
  %784 = vmatpush1.msra.mxu0 %v175
  %785 = vmatprep.subr.mxu0 %v178
  %786 = vmatpush1.msra.mxu0 %v177
  %787 = vmatprep.subr.mxu0 %v180
  %788 = vmatpush1.msra.mxu0 %v179
  %789 = vmatprep.subr.mxu0 %v182
  %790 = vmatpush1.msra.mxu0 %v181
  %791 = vmatprep.subr.mxu0 0.0
  %792 = vmatpush1.msra.mxu0 0.0
  %793 = vmatprep.subr.mxu0 0.0
  %794 = vmatpush1.msra.mxu0 0.0
  %795 = vmatprep.subr.mxu0 0.0
  %796 = vmatpush1.msra.mxu0 0.0
  %797 = vmatprep.subr.mxu0 0.0
  %798 = vmatpush1.msra.mxu0 0.0
  %799 = vmatprep.subr.mxu0 0.0
  %800 = vmatpush1.msra.mxu0 0.0
  %801 = vmatprep.subr.mxu0 0.0
  %802 = vmatpush1.msra.mxu0 0.0
  %803 = vmatprep.subr.mxu0 0.0
  %804 = vmatpush1.msra.mxu0 0.0
  %805 = vmatprep.subr.mxu0 0.0
  %806 = vmatpush1.msra.mxu0 0.0
  %807 = vmatprep.subr.mxu0 0.0
  %808 = vmatpush1.msra.mxu0 0.0
  %809 = vmatprep.subr.mxu0 0.0
  %810 = vmatpush1.msra.mxu0 0.0
  %811 = vmatprep.subr.mxu0 0.0
  %812 = vmatpush1.msra.mxu0 0.0
  %813 = vmatprep.subr.mxu0 0.0
  %814 = vmatpush1.msra.mxu0 0.0
  %815 = vmatprep.subr.mxu0 0.0
  %816 = vmatpush1.msra.mxu0 0.0
  %817 = vmatprep.subr.mxu0 0.0
  %818 = vmatpush1.msra.mxu0 0.0
  %819 = vmatprep.subr.mxu0 0.0
  %820 = vmatpush1.msra.mxu0 0.0
  %821 = vmatprep.subr.mxu0 0.0
  %822 = vmatpush1.msra.mxu0 0.0
  %823 = vmatprep.subr.mxu0 0.0
  %824 = vmatpush1.msra.mxu0 0.0
  %825 = vmatprep.subr.mxu0 0.0
  %826 = vmatpush1.msra.mxu0 0.0
  %827 = vmatprep.subr.mxu0 0.0
  %828 = vmatpush1.msra.mxu0 0.0
  %829 = vmatprep.subr.mxu0 0.0
  %830 = vmatpush1.msra.mxu0 0.0
  %831 = vmatprep.subr.mxu0 0.0
  %832 = vmatpush1.msra.mxu0 0.0
  %833 = vmatprep.subr.mxu0 0.0
  %834 = vmatpush1.msra.mxu0 0.0
  %835 = vmatprep.subr.mxu0 0.0
  %836 = vmatpush1.msra.mxu0 0.0
  %837 = vmatprep.subr.mxu0 0.0
  %838 = vmatpush1.msra.mxu0 0.0
  %839 = vmatprep.subr.mxu0 0.0
  %840 = vmatpush1.msra.mxu0 0.0
  %841 = vmatprep.subr.mxu0 0.0
  %842 = vmatpush1.msra.mxu0 0.0
  %843 = vmatprep.subr.mxu0 0.0
  %844 = vmatpush1.msra.mxu0 0.0
  %845 = vmatprep.subr.mxu0 0.0
  %846 = vmatpush1.msra.mxu0 0.0
  %847 = vmatprep.mubr.f32.mxu0 0.0
  %848 = vmatmul.mubr.f32.gmra.mrb[0].mxu0 %v781
  %v849 = vpop.f32.mrb[0].mxu0
  %v850 = vadd.f32 0.0, %v849
  %v851 = vpop.f32.mrb[0].mxu0
  %v852 = vadd.f32 0.0, %v851
  %853 = vdwg.mxu0
  %v854 = vadd.f32 %v776, %v850
  %v855 = vadd.f32 %v777, %v852
  %857 = vrot.lane.b32.xlu0 %v775, 32
  %v858 = vpop.permute.xlu0 %857
  %v859 = vsel %vm234, %v858, 0
  %861 = vmatprep.subr.mxu0 %v184
  %862 = vmatpush1.msra.mxu0 %v183
  %863 = vmatprep.subr.mxu0 %v186
  %864 = vmatpush1.msra.mxu0 %v185
  %865 = vmatprep.subr.mxu0 %v188
  %866 = vmatpush1.msra.mxu0 %v187
  %867 = vmatprep.subr.mxu0 %v190
  %868 = vmatpush1.msra.mxu0 %v189
  %869 = vmatprep.subr.mxu0 0.0
  %870 = vmatpush1.msra.mxu0 0.0
  %871 = vmatprep.subr.mxu0 0.0
  %872 = vmatpush1.msra.mxu0 0.0
  %873 = vmatprep.subr.mxu0 0.0
  %874 = vmatpush1.msra.mxu0 0.0
  %875 = vmatprep.subr.mxu0 0.0
  %876 = vmatpush1.msra.mxu0 0.0
  %877 = vmatprep.subr.mxu0 0.0
  %878 = vmatpush1.msra.mxu0 0.0
  %879 = vmatprep.subr.mxu0 0.0
  %880 = vmatpush1.msra.mxu0 0.0
  %881 = vmatprep.subr.mxu0 0.0
  %882 = vmatpush1.msra.mxu0 0.0
  %883 = vmatprep.subr.mxu0 0.0
  %884 = vmatpush1.msra.mxu0 0.0
  %885 = vmatprep.subr.mxu0 0.0
  %886 = vmatpush1.msra.mxu0 0.0
  %887 = vmatprep.subr.mxu0 0.0
  %888 = vmatpush1.msra.mxu0 0.0
  %889 = vmatprep.subr.mxu0 0.0
  %890 = vmatpush1.msra.mxu0 0.0
  %891 = vmatprep.subr.mxu0 0.0
  %892 = vmatpush1.msra.mxu0 0.0
  %893 = vmatprep.subr.mxu0 0.0
  %894 = vmatpush1.msra.mxu0 0.0
  %895 = vmatprep.subr.mxu0 0.0
  %896 = vmatpush1.msra.mxu0 0.0
  %897 = vmatprep.subr.mxu0 0.0
  %898 = vmatpush1.msra.mxu0 0.0
  %899 = vmatprep.subr.mxu0 0.0
  %900 = vmatpush1.msra.mxu0 0.0
  %901 = vmatprep.subr.mxu0 0.0
  %902 = vmatpush1.msra.mxu0 0.0
  %903 = vmatprep.subr.mxu0 0.0
  %904 = vmatpush1.msra.mxu0 0.0
  %905 = vmatprep.subr.mxu0 0.0
  %906 = vmatpush1.msra.mxu0 0.0
  %907 = vmatprep.subr.mxu0 0.0
  %908 = vmatpush1.msra.mxu0 0.0
  %909 = vmatprep.subr.mxu0 0.0
  %910 = vmatpush1.msra.mxu0 0.0
  %911 = vmatprep.subr.mxu0 0.0
  %912 = vmatpush1.msra.mxu0 0.0
  %913 = vmatprep.subr.mxu0 0.0
  %914 = vmatpush1.msra.mxu0 0.0
  %915 = vmatprep.subr.mxu0 0.0
  %916 = vmatpush1.msra.mxu0 0.0
  %917 = vmatprep.subr.mxu0 0.0
  %918 = vmatpush1.msra.mxu0 0.0
  %919 = vmatprep.subr.mxu0 0.0
  %920 = vmatpush1.msra.mxu0 0.0
  %921 = vmatprep.subr.mxu0 0.0
  %922 = vmatpush1.msra.mxu0 0.0
  %923 = vmatprep.subr.mxu0 0.0
  %924 = vmatpush1.msra.mxu0 0.0
  %925 = vmatprep.mubr.f32.mxu0 0.0
  %926 = vmatmul.mubr.f32.gmra.mrb[0].mxu0 %v859
  %v927 = vpop.f32.mrb[0].mxu0
  %v928 = vadd.f32 0.0, %v927
  %v929 = vpop.f32.mrb[0].mxu0
  %v930 = vadd.f32 0.0, %v929
  %931 = vdwg.mxu0
  %v932 = vadd.f32 %v854, %v928
  %v933 = vadd.f32 %v855, %v930
  %v934 = vxor.u32 %v932, 2147483648
  %v935 = vxor.u32 %v933, 2147483648
  %v936 = vmul.f32 %v934, 1.442695
  %v937 = vpow.pop %v936
  %v938 = vmul.f32 %v935, 1.442695
  %v939 = vpow.pop %v938
  %v940 = vadd.f32 %v937, 1.0
  %v941 = vadd.f32 %v939, 1.0
  %v942 = vrcp.pop %v940
  %v943 = vmul.f32 1.0, %v942
  %v944 = vrcp.pop %v941
  %v945 = vmul.f32 1.0, %v944
  %v946 = vmul.f32 %v943, 2.0
  %v947 = vsub.f32 %v946, 1.0
  %v948 = vmul.f32 %v943, %v750
  %950 = vrot.lane.b32.xlu0 %v947, 64
  %v951 = vpop.permute.xlu0 %950
  %v953 = vmul.f32 %v943, %v951
  %955 = vrot.lane.b32.xlu0 %v953, 32
  %v956 = vpop.permute.xlu0 %955
  %v958 = vadd.f32 %v948, %v956
  %v959 = vtanh.pop %v958
  %961 = vrot.lane.b32.xlu0 %v959, 64
  %v962 = vpop.permute.xlu0 %961
  %v964 = vmul.f32 %v943, %v962
  %v965 = vmul.f32 %v945, 2.0
  %v966 = vsub.f32 %v965, 1.0
  %v967 = vmul.f32 %v945, %v769
  %969 = vrot.lane.b32.xlu0 %v966, 64
  %v970 = vpop.permute.xlu0 %969
  %v972 = vmul.f32 %v945, %v970
  %974 = vrot.lane.b32.xlu0 %v972, 32
  %v975 = vpop.permute.xlu0 %974
  %v977 = vadd.f32 %v967, %v975
  %v978 = vtanh.pop %v977
  %980 = vrot.lane.b32.xlu0 %v978, 64
  %v981 = vpop.permute.xlu0 %980
  %v983 = vmul.f32 %v945, %v981
  %v984 = vadd.f32 %v196, %v159
  %v985 = vadd.f32 %v200, %v161
  %987 = vrot.lane.b32.xlu0 %v964, 32
  %v988 = vpop.permute.xlu0 %987
  %v989 = vsel %vm234, %v988, 0
  %991 = vmatprep.subr.mxu0 %v176
  %992 = vmatpush1.msra.mxu0 %v175
  %993 = vmatprep.subr.mxu0 %v178
  %994 = vmatpush1.msra.mxu0 %v177
  %995 = vmatprep.subr.mxu0 %v180
  %996 = vmatpush1.msra.mxu0 %v179
  %997 = vmatprep.subr.mxu0 %v182
  %998 = vmatpush1.msra.mxu0 %v181
  %999 = vmatprep.subr.mxu0 0.0
  %1000 = vmatpush1.msra.mxu0 0.0
  %1001 = vmatprep.subr.mxu0 0.0
  %1002 = vmatpush1.msra.mxu0 0.0
  %1003 = vmatprep.subr.mxu0 0.0
  %1004 = vmatpush1.msra.mxu0 0.0
  %1005 = vmatprep.subr.mxu0 0.0
  %1006 = vmatpush1.msra.mxu0 0.0
  %1007 = vmatprep.subr.mxu0 0.0
  %1008 = vmatpush1.msra.mxu0 0.0
  %1009 = vmatprep.subr.mxu0 0.0
  %1010 = vmatpush1.msra.mxu0 0.0
  %1011 = vmatprep.subr.mxu0 0.0
  %1012 = vmatpush1.msra.mxu0 0.0
  %1013 = vmatprep.subr.mxu0 0.0
  %1014 = vmatpush1.msra.mxu0 0.0
  %1015 = vmatprep.subr.mxu0 0.0
  %1016 = vmatpush1.msra.mxu0 0.0
  %1017 = vmatprep.subr.mxu0 0.0
  %1018 = vmatpush1.msra.mxu0 0.0
  %1019 = vmatprep.subr.mxu0 0.0
  %1020 = vmatpush1.msra.mxu0 0.0
  %1021 = vmatprep.subr.mxu0 0.0
  %1022 = vmatpush1.msra.mxu0 0.0
  %1023 = vmatprep.subr.mxu0 0.0
  %1024 = vmatpush1.msra.mxu0 0.0
  %1025 = vmatprep.subr.mxu0 0.0
  %1026 = vmatpush1.msra.mxu0 0.0
  %1027 = vmatprep.subr.mxu0 0.0
  %1028 = vmatpush1.msra.mxu0 0.0
  %1029 = vmatprep.subr.mxu0 0.0
  %1030 = vmatpush1.msra.mxu0 0.0
  %1031 = vmatprep.subr.mxu0 0.0
  %1032 = vmatpush1.msra.mxu0 0.0
  %1033 = vmatprep.subr.mxu0 0.0
  %1034 = vmatpush1.msra.mxu0 0.0
  %1035 = vmatprep.subr.mxu0 0.0
  %1036 = vmatpush1.msra.mxu0 0.0
  %1037 = vmatprep.subr.mxu0 0.0
  %1038 = vmatpush1.msra.mxu0 0.0
  %1039 = vmatprep.subr.mxu0 0.0
  %1040 = vmatpush1.msra.mxu0 0.0
  %1041 = vmatprep.subr.mxu0 0.0
  %1042 = vmatpush1.msra.mxu0 0.0
  %1043 = vmatprep.subr.mxu0 0.0
  %1044 = vmatpush1.msra.mxu0 0.0
  %1045 = vmatprep.subr.mxu0 0.0
  %1046 = vmatpush1.msra.mxu0 0.0
  %1047 = vmatprep.subr.mxu0 0.0
  %1048 = vmatpush1.msra.mxu0 0.0
  %1049 = vmatprep.subr.mxu0 0.0
  %1050 = vmatpush1.msra.mxu0 0.0
  %1051 = vmatprep.subr.mxu0 0.0
  %1052 = vmatpush1.msra.mxu0 0.0
  %1053 = vmatprep.subr.mxu0 0.0
  %1054 = vmatpush1.msra.mxu0 0.0
  %1055 = vmatprep.mubr.f32.mxu0 0.0
  %1056 = vmatmul.mubr.f32.gmra.mrb[0].mxu0 %v989
  %v1057 = vpop.f32.mrb[0].mxu0
  %v1058 = vadd.f32 0.0, %v1057
  %v1059 = vpop.f32.mrb[0].mxu0
  %v1060 = vadd.f32 0.0, %v1059
  %1061 = vdwg.mxu0
  %v1062 = vadd.f32 %v984, %v1058
  %v1063 = vadd.f32 %v985, %v1060
  %1065 = vrot.lane.b32.xlu0 %v983, 32
  %v1066 = vpop.permute.xlu0 %1065
  %v1067 = vsel %vm234, %v1066, 0
  %1069 = vmatprep.subr.mxu0 %v184
  %1070 = vmatpush1.msra.mxu0 %v183
  %1071 = vmatprep.subr.mxu0 %v186
  %1072 = vmatpush1.msra.mxu0 %v185
  %1073 = vmatprep.subr.mxu0 %v188
  %1074 = vmatpush1.msra.mxu0 %v187
  %1075 = vmatprep.subr.mxu0 %v190
  %1076 = vmatpush1.msra.mxu0 %v189
  %1077 = vmatprep.subr.mxu0 0.0
  %1078 = vmatpush1.msra.mxu0 0.0
  %1079 = vmatprep.subr.mxu0 0.0
  %1080 = vmatpush1.msra.mxu0 0.0
  %1081 = vmatprep.subr.mxu0 0.0
  %1082 = vmatpush1.msra.mxu0 0.0
  %1083 = vmatprep.subr.mxu0 0.0
  %1084 = vmatpush1.msra.mxu0 0.0
  %1085 = vmatprep.subr.mxu0 0.0
  %1086 = vmatpush1.msra.mxu0 0.0
  %1087 = vmatprep.subr.mxu0 0.0
  %1088 = vmatpush1.msra.mxu0 0.0
  %1089 = vmatprep.subr.mxu0 0.0
  %1090 = vmatpush1.msra.mxu0 0.0
  %1091 = vmatprep.subr.mxu0 0.0
  %1092 = vmatpush1.msra.mxu0 0.0
  %1093 = vmatprep.subr.mxu0 0.0
  %1094 = vmatpush1.msra.mxu0 0.0
  %1095 = vmatprep.subr.mxu0 0.0
  %1096 = vmatpush1.msra.mxu0 0.0
  %1097 = vmatprep.subr.mxu0 0.0
  %1098 = vmatpush1.msra.mxu0 0.0
  %1099 = vmatprep.subr.mxu0 0.0
  %1100 = vmatpush1.msra.mxu0 0.0
  %1101 = vmatprep.subr.mxu0 0.0
  %1102 = vmatpush1.msra.mxu0 0.0
  %1103 = vmatprep.subr.mxu0 0.0
  %1104 = vmatpush1.msra.mxu0 0.0
  %1105 = vmatprep.subr.mxu0 0.0
  %1106 = vmatpush1.msra.mxu0 0.0
  %1107 = vmatprep.subr.mxu0 0.0
  %1108 = vmatpush1.msra.mxu0 0.0
  %1109 = vmatprep.subr.mxu0 0.0
  %1110 = vmatpush1.msra.mxu0 0.0
  %1111 = vmatprep.subr.mxu0 0.0
  %1112 = vmatpush1.msra.mxu0 0.0
  %1113 = vmatprep.subr.mxu0 0.0
  %1114 = vmatpush1.msra.mxu0 0.0
  %1115 = vmatprep.subr.mxu0 0.0
  %1116 = vmatpush1.msra.mxu0 0.0
  %1117 = vmatprep.subr.mxu0 0.0
  %1118 = vmatpush1.msra.mxu0 0.0
  %1119 = vmatprep.subr.mxu0 0.0
  %1120 = vmatpush1.msra.mxu0 0.0
  %1121 = vmatprep.subr.mxu0 0.0
  %1122 = vmatpush1.msra.mxu0 0.0
  %1123 = vmatprep.subr.mxu0 0.0
  %1124 = vmatpush1.msra.mxu0 0.0
  %1125 = vmatprep.subr.mxu0 0.0
  %1126 = vmatpush1.msra.mxu0 0.0
  %1127 = vmatprep.subr.mxu0 0.0
  %1128 = vmatpush1.msra.mxu0 0.0
  %1129 = vmatprep.subr.mxu0 0.0
  %1130 = vmatpush1.msra.mxu0 0.0
  %1131 = vmatprep.subr.mxu0 0.0
  %1132 = vmatpush1.msra.mxu0 0.0
  %1133 = vmatprep.mubr.f32.mxu0 0.0
  %1134 = vmatmul.mubr.f32.gmra.mrb[0].mxu0 %v1067
  %v1135 = vpop.f32.mrb[0].mxu0
  %v1136 = vadd.f32 0.0, %v1135
  %v1137 = vpop.f32.mrb[0].mxu0
  %v1138 = vadd.f32 0.0, %v1137
  %1139 = vdwg.mxu0
  %v1140 = vadd.f32 %v1062, %v1136
  %v1141 = vadd.f32 %v1063, %v1138
  %v1142 = vxor.u32 %v1140, 2147483648
  %v1143 = vxor.u32 %v1141, 2147483648
  %v1144 = vmul.f32 %v1142, 1.442695
  %v1145 = vpow.pop %v1144
  %v1146 = vmul.f32 %v1143, 1.442695
  %v1147 = vpow.pop %v1146
  %v1148 = vadd.f32 %v1145, 1.0
  %v1149 = vadd.f32 %v1147, 1.0
  %v1150 = vrcp.pop %v1148
  %v1151 = vmul.f32 1.0, %v1150
  %v1152 = vrcp.pop %v1149
  %v1153 = vmul.f32 1.0, %v1152
  %v1154 = vmul.f32 %v1151, 2.0
  %v1155 = vsub.f32 %v1154, 1.0
  %v1156 = vmul.f32 %v1151, %v958
  %1158 = vrot.lane.b32.xlu0 %v1155, 64
  %v1159 = vpop.permute.xlu0 %1158
  %v1161 = vmul.f32 %v1151, %v1159
  %1163 = vrot.lane.b32.xlu0 %v1161, 32
  %v1164 = vpop.permute.xlu0 %1163
  %v1166 = vadd.f32 %v1156, %v1164
  %v1167 = vtanh.pop %v1166
  %1169 = vrot.lane.b32.xlu0 %v1167, 64
  %v1170 = vpop.permute.xlu0 %1169
  %v1172 = vmul.f32 %v1151, %v1170
  %v1173 = vmul.f32 %v1153, 2.0
  %v1174 = vsub.f32 %v1173, 1.0
  %v1175 = vmul.f32 %v1153, %v977
  %1177 = vrot.lane.b32.xlu0 %v1174, 64
  %v1178 = vpop.permute.xlu0 %1177
  %v1180 = vmul.f32 %v1153, %v1178
  %1182 = vrot.lane.b32.xlu0 %v1180, 32
  %v1183 = vpop.permute.xlu0 %1182
  %v1185 = vadd.f32 %v1175, %v1183
  %v1186 = vtanh.pop %v1185
  %1188 = vrot.lane.b32.xlu0 %v1186, 64
  %v1189 = vpop.permute.xlu0 %1188
  %v1191 = vmul.f32 %v1153, %v1189
  %v1192 = vadd.f32 %v196, %v165
  %v1193 = vadd.f32 %v200, %v167
  %1195 = vrot.lane.b32.xlu0 %v1172, 32
  %v1196 = vpop.permute.xlu0 %1195
  %v1197 = vsel %vm234, %v1196, 0
  %1199 = vmatprep.subr.mxu0 %v176
  %1200 = vmatpush1.msra.mxu0 %v175
  %1201 = vmatprep.subr.mxu0 %v178
  %1202 = vmatpush1.msra.mxu0 %v177
  %1203 = vmatprep.subr.mxu0 %v180
  %1204 = vmatpush1.msra.mxu0 %v179
  %1205 = vmatprep.subr.mxu0 %v182
  %1206 = vmatpush1.msra.mxu0 %v181
  %1207 = vmatprep.subr.mxu0 0.0
  %1208 = vmatpush1.msra.mxu0 0.0
  %1209 = vmatprep.subr.mxu0 0.0
  %1210 = vmatpush1.msra.mxu0 0.0
  %1211 = vmatprep.subr.mxu0 0.0
  %1212 = vmatpush1.msra.mxu0 0.0
  %1213 = vmatprep.subr.mxu0 0.0
  %1214 = vmatpush1.msra.mxu0 0.0
  %1215 = vmatprep.subr.mxu0 0.0
  %1216 = vmatpush1.msra.mxu0 0.0
  %1217 = vmatprep.subr.mxu0 0.0
  %1218 = vmatpush1.msra.mxu0 0.0
  %1219 = vmatprep.subr.mxu0 0.0
  %1220 = vmatpush1.msra.mxu0 0.0
  %1221 = vmatprep.subr.mxu0 0.0
  %1222 = vmatpush1.msra.mxu0 0.0
  %1223 = vmatprep.subr.mxu0 0.0
  %1224 = vmatpush1.msra.mxu0 0.0
  %1225 = vmatprep.subr.mxu0 0.0
  %1226 = vmatpush1.msra.mxu0 0.0
  %1227 = vmatprep.subr.mxu0 0.0
  %1228 = vmatpush1.msra.mxu0 0.0
  %1229 = vmatprep.subr.mxu0 0.0
  %1230 = vmatpush1.msra.mxu0 0.0
  %1231 = vmatprep.subr.mxu0 0.0
  %1232 = vmatpush1.msra.mxu0 0.0
  %1233 = vmatprep.subr.mxu0 0.0
  %1234 = vmatpush1.msra.mxu0 0.0
  %1235 = vmatprep.subr.mxu0 0.0
  %1236 = vmatpush1.msra.mxu0 0.0
  %1237 = vmatprep.subr.mxu0 0.0
  %1238 = vmatpush1.msra.mxu0 0.0
  %1239 = vmatprep.subr.mxu0 0.0
  %1240 = vmatpush1.msra.mxu0 0.0
  %1241 = vmatprep.subr.mxu0 0.0
  %1242 = vmatpush1.msra.mxu0 0.0
  %1243 = vmatprep.subr.mxu0 0.0
  %1244 = vmatpush1.msra.mxu0 0.0
  %1245 = vmatprep.subr.mxu0 0.0
  %1246 = vmatpush1.msra.mxu0 0.0
  %1247 = vmatprep.subr.mxu0 0.0
  %1248 = vmatpush1.msra.mxu0 0.0
  %1249 = vmatprep.subr.mxu0 0.0
  %1250 = vmatpush1.msra.mxu0 0.0
  %1251 = vmatprep.subr.mxu0 0.0
  %1252 = vmatpush1.msra.mxu0 0.0
  %1253 = vmatprep.subr.mxu0 0.0
  %1254 = vmatpush1.msra.mxu0 0.0
  %1255 = vmatprep.subr.mxu0 0.0
  %1256 = vmatpush1.msra.mxu0 0.0
  %1257 = vmatprep.subr.mxu0 0.0
  %1258 = vmatpush1.msra.mxu0 0.0
  %1259 = vmatprep.subr.mxu0 0.0
  %1260 = vmatpush1.msra.mxu0 0.0
  %1261 = vmatprep.subr.mxu0 0.0
  %1262 = vmatpush1.msra.mxu0 0.0
  %1263 = vmatprep.mubr.f32.mxu0 0.0
  %1264 = vmatmul.mubr.f32.gmra.mrb[0].mxu0 %v1197
  %v1265 = vpop.f32.mrb[0].mxu0
  %v1266 = vadd.f32 0.0, %v1265
  %v1267 = vpop.f32.mrb[0].mxu0
  %v1268 = vadd.f32 0.0, %v1267
  %1269 = vdwg.mxu0
  %v1270 = vadd.f32 %v1192, %v1266
  %v1271 = vadd.f32 %v1193, %v1268
  %1273 = vrot.lane.b32.xlu0 %v1191, 32
  %v1274 = vpop.permute.xlu0 %1273
  %v1275 = vsel %vm234, %v1274, 0
  %1277 = vmatprep.subr.mxu0 %v184
  %1278 = vmatpush1.msra.mxu0 %v183
  %1279 = vmatprep.subr.mxu0 %v186
  %1280 = vmatpush1.msra.mxu0 %v185
  %1281 = vmatprep.subr.mxu0 %v188
  %1282 = vmatpush1.msra.mxu0 %v187
  %1283 = vmatprep.subr.mxu0 %v190
  %1284 = vmatpush1.msra.mxu0 %v189
  %1285 = vmatprep.subr.mxu0 0.0
  %1286 = vmatpush1.msra.mxu0 0.0
  %1287 = vmatprep.subr.mxu0 0.0
  %1288 = vmatpush1.msra.mxu0 0.0
  %1289 = vmatprep.subr.mxu0 0.0
  %1290 = vmatpush1.msra.mxu0 0.0
  %1291 = vmatprep.subr.mxu0 0.0
  %1292 = vmatpush1.msra.mxu0 0.0
  %1293 = vmatprep.subr.mxu0 0.0
  %1294 = vmatpush1.msra.mxu0 0.0
  %1295 = vmatprep.subr.mxu0 0.0
  %1296 = vmatpush1.msra.mxu0 0.0
  %1297 = vmatprep.subr.mxu0 0.0
  %1298 = vmatpush1.msra.mxu0 0.0
  %1299 = vmatprep.subr.mxu0 0.0
  %1300 = vmatpush1.msra.mxu0 0.0
  %1301 = vmatprep.subr.mxu0 0.0
  %1302 = vmatpush1.msra.mxu0 0.0
  %1303 = vmatprep.subr.mxu0 0.0
  %1304 = vmatpush1.msra.mxu0 0.0
  %1305 = vmatprep.subr.mxu0 0.0
  %1306 = vmatpush1.msra.mxu0 0.0
  %1307 = vmatprep.subr.mxu0 0.0
  %1308 = vmatpush1.msra.mxu0 0.0
  %1309 = vmatprep.subr.mxu0 0.0
  %1310 = vmatpush1.msra.mxu0 0.0
  %1311 = vmatprep.subr.mxu0 0.0
  %1312 = vmatpush1.msra.mxu0 0.0
  %1313 = vmatprep.subr.mxu0 0.0
  %1314 = vmatpush1.msra.mxu0 0.0
  %1315 = vmatprep.subr.mxu0 0.0
  %1316 = vmatpush1.msra.mxu0 0.0
  %1317 = vmatprep.subr.mxu0 0.0
  %1318 = vmatpush1.msra.mxu0 0.0
  %1319 = vmatprep.subr.mxu0 0.0
  %1320 = vmatpush1.msra.mxu0 0.0
  %1321 = vmatprep.subr.mxu0 0.0
  %1322 = vmatpush1.msra.mxu0 0.0
  %1323 = vmatprep.subr.mxu0 0.0
  %1324 = vmatpush1.msra.mxu0 0.0
  %1325 = vmatprep.subr.mxu0 0.0
  %1326 = vmatpush1.msra.mxu0 0.0
  %1327 = vmatprep.subr.mxu0 0.0
  %1328 = vmatpush1.msra.mxu0 0.0
  %1329 = vmatprep.subr.mxu0 0.0
  %1330 = vmatpush1.msra.mxu0 0.0
  %1331 = vmatprep.subr.mxu0 0.0
  %1332 = vmatpush1.msra.mxu0 0.0
  %1333 = vmatprep.subr.mxu0 0.0
  %1334 = vmatpush1.msra.mxu0 0.0
  %1335 = vmatprep.subr.mxu0 0.0
  %1336 = vmatpush1.msra.mxu0 0.0
  %1337 = vmatprep.subr.mxu0 0.0
  %1338 = vmatpush1.msra.mxu0 0.0
  %1339 = vmatprep.subr.mxu0 0.0
  %1340 = vmatpush1.msra.mxu0 0.0
  %1341 = vmatprep.mubr.f32.mxu0 0.0
  %1342 = vmatmul.mubr.f32.gmra.mrb[0].mxu0 %v1275
  %v1343 = vpop.f32.mrb[0].mxu0
  %v1344 = vadd.f32 0.0, %v1343
  %v1345 = vpop.f32.mrb[0].mxu0
  %v1346 = vadd.f32 0.0, %v1345
  %1347 = vdwg.mxu0
  %v1348 = vadd.f32 %v1270, %v1344
  %v1349 = vadd.f32 %v1271, %v1346
  %v1350 = vxor.u32 %v1348, 2147483648
  %v1351 = vxor.u32 %v1349, 2147483648
  %v1352 = vmul.f32 %v1350, 1.442695
  %v1353 = vpow.pop %v1352
  %v1354 = vmul.f32 %v1351, 1.442695
  %v1355 = vpow.pop %v1354
  %v1356 = vadd.f32 %v1353, 1.0
  %v1357 = vadd.f32 %v1355, 1.0
  %v1358 = vrcp.pop %v1356
  %v1359 = vmul.f32 1.0, %v1358
  %v1360 = vrcp.pop %v1357
  %v1361 = vmul.f32 1.0, %v1360
  %v1362 = vmul.f32 %v1359, 2.0
  %v1363 = vsub.f32 %v1362, 1.0
  %v1364 = vmul.f32 %v1359, %v1166
  %1366 = vrot.lane.b32.xlu0 %v1363, 64
  %v1367 = vpop.permute.xlu0 %1366
  %v1369 = vmul.f32 %v1359, %v1367
  %1371 = vrot.lane.b32.xlu0 %v1369, 32
  %v1372 = vpop.permute.xlu0 %1371
  %v1374 = vadd.f32 %v1364, %v1372
  %v1375 = vtanh.pop %v1374
  %1377 = vrot.lane.b32.xlu0 %v1375, 64
  %v1378 = vpop.permute.xlu0 %1377
  %v1380 = vmul.f32 %v1359, %v1378
  %v1381 = vmul.f32 %v1361, 2.0
  %v1382 = vsub.f32 %v1381, 1.0
  %v1383 = vmul.f32 %v1361, %v1185
  %1385 = vrot.lane.b32.xlu0 %v1382, 64
  %v1386 = vpop.permute.xlu0 %1385
  %v1388 = vmul.f32 %v1361, %v1386
  %1390 = vrot.lane.b32.xlu0 %v1388, 32
  %v1391 = vpop.permute.xlu0 %1390
  %v1393 = vadd.f32 %v1383, %v1391
  %v1394 = vtanh.pop %v1393
  %1396 = vrot.lane.b32.xlu0 %v1394, 64
  %v1397 = vpop.permute.xlu0 %1396
  %v1399 = vmul.f32 %v1361, %v1397
  %v1400 = vadd.f32 %v196, %v171
  %v1401 = vadd.f32 %v200, %v173
  %1403 = vrot.lane.b32.xlu0 %v1380, 32
  %v1404 = vpop.permute.xlu0 %1403
  %v1405 = vsel %vm234, %v1404, 0
  %1407 = vmatprep.subr.mxu0 %v176
  %1408 = vmatpush1.msra.mxu0 %v175
  %1409 = vmatprep.subr.mxu0 %v178
  %1410 = vmatpush1.msra.mxu0 %v177
  %1411 = vmatprep.subr.mxu0 %v180
  %1412 = vmatpush1.msra.mxu0 %v179
  %1413 = vmatprep.subr.mxu0 %v182
  %1414 = vmatpush1.msra.mxu0 %v181
  %1415 = vmatprep.subr.mxu0 0.0
  %1416 = vmatpush1.msra.mxu0 0.0
  %1417 = vmatprep.subr.mxu0 0.0
  %1418 = vmatpush1.msra.mxu0 0.0
  %1419 = vmatprep.subr.mxu0 0.0
  %1420 = vmatpush1.msra.mxu0 0.0
  %1421 = vmatprep.subr.mxu0 0.0
  %1422 = vmatpush1.msra.mxu0 0.0
  %1423 = vmatprep.subr.mxu0 0.0
  %1424 = vmatpush1.msra.mxu0 0.0
  %1425 = vmatprep.subr.mxu0 0.0
  %1426 = vmatpush1.msra.mxu0 0.0
  %1427 = vmatprep.subr.mxu0 0.0
  %1428 = vmatpush1.msra.mxu0 0.0
  %1429 = vmatprep.subr.mxu0 0.0
  %1430 = vmatpush1.msra.mxu0 0.0
  %1431 = vmatprep.subr.mxu0 0.0
  %1432 = vmatpush1.msra.mxu0 0.0
  %1433 = vmatprep.subr.mxu0 0.0
  %1434 = vmatpush1.msra.mxu0 0.0
  %1435 = vmatprep.subr.mxu0 0.0
  %1436 = vmatpush1.msra.mxu0 0.0
  %1437 = vmatprep.subr.mxu0 0.0
  %1438 = vmatpush1.msra.mxu0 0.0
  %1439 = vmatprep.subr.mxu0 0.0
  %1440 = vmatpush1.msra.mxu0 0.0
  %1441 = vmatprep.subr.mxu0 0.0
  %1442 = vmatpush1.msra.mxu0 0.0
  %1443 = vmatprep.subr.mxu0 0.0
  %1444 = vmatpush1.msra.mxu0 0.0
  %1445 = vmatprep.subr.mxu0 0.0
  %1446 = vmatpush1.msra.mxu0 0.0
  %1447 = vmatprep.subr.mxu0 0.0
  %1448 = vmatpush1.msra.mxu0 0.0
  %1449 = vmatprep.subr.mxu0 0.0
  %1450 = vmatpush1.msra.mxu0 0.0
  %1451 = vmatprep.subr.mxu0 0.0
  %1452 = vmatpush1.msra.mxu0 0.0
  %1453 = vmatprep.subr.mxu0 0.0
  %1454 = vmatpush1.msra.mxu0 0.0
  %1455 = vmatprep.subr.mxu0 0.0
  %1456 = vmatpush1.msra.mxu0 0.0
  %1457 = vmatprep.subr.mxu0 0.0
  %1458 = vmatpush1.msra.mxu0 0.0
  %1459 = vmatprep.subr.mxu0 0.0
  %1460 = vmatpush1.msra.mxu0 0.0
  %1461 = vmatprep.subr.mxu0 0.0
  %1462 = vmatpush1.msra.mxu0 0.0
  %1463 = vmatprep.subr.mxu0 0.0
  %1464 = vmatpush1.msra.mxu0 0.0
  %1465 = vmatprep.subr.mxu0 0.0
  %1466 = vmatpush1.msra.mxu0 0.0
  %1467 = vmatprep.subr.mxu0 0.0
  %1468 = vmatpush1.msra.mxu0 0.0
  %1469 = vmatprep.subr.mxu0 0.0
  %1470 = vmatpush1.msra.mxu0 0.0
  %1471 = vmatprep.mubr.f32.mxu0 0.0
  %1472 = vmatmul.mubr.f32.gmra.mrb[0].mxu0 %v1405
  %v1473 = vpop.f32.mrb[0].mxu0
  %v1474 = vadd.f32 0.0, %v1473
  %v1475 = vpop.f32.mrb[0].mxu0
  %v1476 = vadd.f32 0.0, %v1475
  %1477 = vdwg.mxu0
  %v1478 = vadd.f32 %v1400, %v1474
  %v1479 = vadd.f32 %v1401, %v1476
  %1481 = vrot.lane.b32.xlu0 %v1399, 32
  %v1482 = vpop.permute.xlu0 %1481
  %v1483 = vsel %vm234, %v1482, 0
  %1485 = vmatprep.subr.mxu0 %v184
  %1486 = vmatpush1.msra.mxu0 %v183
  %1487 = vmatprep.subr.mxu0 %v186
  %1488 = vmatpush1.msra.mxu0 %v185
  %1489 = vmatprep.subr.mxu0 %v188
  %1490 = vmatpush1.msra.mxu0 %v187
  %1491 = vmatprep.subr.mxu0 %v190
  %1492 = vmatpush1.msra.mxu0 %v189
  %1493 = vmatprep.subr.mxu0 0.0
  %1494 = vmatpush1.msra.mxu0 0.0
  %1495 = vmatprep.subr.mxu0 0.0
  %1496 = vmatpush1.msra.mxu0 0.0
  %1497 = vmatprep.subr.mxu0 0.0
  %1498 = vmatpush1.msra.mxu0 0.0
  %1499 = vmatprep.subr.mxu0 0.0
  %1500 = vmatpush1.msra.mxu0 0.0
  %1501 = vmatprep.subr.mxu0 0.0
  %1502 = vmatpush1.msra.mxu0 0.0
  %1503 = vmatprep.subr.mxu0 0.0
  %1504 = vmatpush1.msra.mxu0 0.0
  %1505 = vmatprep.subr.mxu0 0.0
  %1506 = vmatpush1.msra.mxu0 0.0
  %1507 = vmatprep.subr.mxu0 0.0
  %1508 = vmatpush1.msra.mxu0 0.0
  %1509 = vmatprep.subr.mxu0 0.0
  %1510 = vmatpush1.msra.mxu0 0.0
  %1511 = vmatprep.subr.mxu0 0.0
  %1512 = vmatpush1.msra.mxu0 0.0
  %1513 = vmatprep.subr.mxu0 0.0
  %1514 = vmatpush1.msra.mxu0 0.0
  %1515 = vmatprep.subr.mxu0 0.0
  %1516 = vmatpush1.msra.mxu0 0.0
  %1517 = vmatprep.subr.mxu0 0.0
  %1518 = vmatpush1.msra.mxu0 0.0
  %1519 = vmatprep.subr.mxu0 0.0
  %1520 = vmatpush1.msra.mxu0 0.0
  %1521 = vmatprep.subr.mxu0 0.0
  %1522 = vmatpush1.msra.mxu0 0.0
  %1523 = vmatprep.subr.mxu0 0.0
  %1524 = vmatpush1.msra.mxu0 0.0
  %1525 = vmatprep.subr.mxu0 0.0
  %1526 = vmatpush1.msra.mxu0 0.0
  %1527 = vmatprep.subr.mxu0 0.0
  %1528 = vmatpush1.msra.mxu0 0.0
  %1529 = vmatprep.subr.mxu0 0.0
  %1530 = vmatpush1.msra.mxu0 0.0
  %1531 = vmatprep.subr.mxu0 0.0
  %1532 = vmatpush1.msra.mxu0 0.0
  %1533 = vmatprep.subr.mxu0 0.0
  %1534 = vmatpush1.msra.mxu0 0.0
  %1535 = vmatprep.subr.mxu0 0.0
  %1536 = vmatpush1.msra.mxu0 0.0
  %1537 = vmatprep.subr.mxu0 0.0
  %1538 = vmatpush1.msra.mxu0 0.0
  %1539 = vmatprep.subr.mxu0 0.0
  %1540 = vmatpush1.msra.mxu0 0.0
  %1541 = vmatprep.subr.mxu0 0.0
  %1542 = vmatpush1.msra.mxu0 0.0
  %1543 = vmatprep.subr.mxu0 0.0
  %1544 = vmatpush1.msra.mxu0 0.0
  %1545 = vmatprep.subr.mxu0 0.0
  %1546 = vmatpush1.msra.mxu0 0.0
  %1547 = vmatprep.subr.mxu0 0.0
  %1548 = vmatpush1.msra.mxu0 0.0
  %1549 = vmatprep.mubr.f32.mxu0 0.0
  %1550 = vmatmul.mubr.f32.gmra.mrb[0].mxu0 %v1483
  %v1551 = vpop.f32.mrb[0].mxu0
  %v1552 = vadd.f32 0.0, %v1551
  %v1553 = vpop.f32.mrb[0].mxu0
  %v1554 = vadd.f32 0.0, %v1553
  %1555 = vdwg.mxu0
  %v1556 = vadd.f32 %v1478, %v1552
  %v1557 = vadd.f32 %v1479, %v1554
  %v1558 = vxor.u32 %v1556, 2147483648
  %v1559 = vxor.u32 %v1557, 2147483648
  %v1560 = vmul.f32 %v1558, 1.442695
  %v1561 = vpow.pop %v1560
  %v1562 = vmul.f32 %v1559, 1.442695
  %v1563 = vpow.pop %v1562
  %v1564 = vadd.f32 %v1561, 1.0
  %v1565 = vadd.f32 %v1563, 1.0
  %v1566 = vrcp.pop %v1564
  %v1567 = vmul.f32 1.0, %v1566
  %v1568 = vrcp.pop %v1565
  %v1569 = vmul.f32 1.0, %v1568
  %v1570 = vmul.f32 %v1567, 2.0
  %v1571 = vsub.f32 %v1570, 1.0
  %v1572 = vmul.f32 %v1567, %v1374
  %1574 = vrot.lane.b32.xlu0 %v1571, 64
  %v1575 = vpop.permute.xlu0 %1574
  %v1577 = vmul.f32 %v1567, %v1575
  %1579 = vrot.lane.b32.xlu0 %v1577, 32
  %v1580 = vpop.permute.xlu0 %1579
  %v1582 = vadd.f32 %v1572, %v1580
  %v1583 = vtanh.pop %v1582
  %1585 = vrot.lane.b32.xlu0 %v1583, 64
  %v1586 = vpop.permute.xlu0 %1585
  %v1588 = vmul.f32 %v1567, %v1586
  %v1589 = vmul.f32 %v1569, 2.0
  %v1590 = vsub.f32 %v1589, 1.0
  %v1591 = vmul.f32 %v1569, %v1393
  %1593 = vrot.lane.b32.xlu0 %v1590, 64
  %v1594 = vpop.permute.xlu0 %1593
  %v1596 = vmul.f32 %v1569, %v1594
  %1598 = vrot.lane.b32.xlu0 %v1596, 32
  %v1599 = vpop.permute.xlu0 %1598
  %v1601 = vadd.f32 %v1591, %v1599
  %v1602 = vtanh.pop %v1601
  %1604 = vrot.lane.b32.xlu0 %v1602, 64
  %v1605 = vpop.permute.xlu0 %1604
  %v1607 = vmul.f32 %v1569, %v1605
  %1609 = vrot.lane.b32.xlu0 %v1588, 32
  %v1610 = vpop.permute.xlu0 %1609
  %v1611 = vsel %vm234, %v1610, 0
  %1613 = vmatprep.subr.mxu0 %v176
  %1614 = vmatpush1.msra.mxu0 %v175
  %1615 = vmatprep.subr.mxu0 %v178
  %1616 = vmatpush1.msra.mxu0 %v177
  %1617 = vmatprep.subr.mxu0 %v180
  %1618 = vmatpush1.msra.mxu0 %v179
  %1619 = vmatprep.subr.mxu0 %v182
  %1620 = vmatpush1.msra.mxu0 %v181
  %1621 = vmatprep.subr.mxu0 0.0
  %1622 = vmatpush1.msra.mxu0 0.0
  %1623 = vmatprep.subr.mxu0 0.0
  %1624 = vmatpush1.msra.mxu0 0.0
  %1625 = vmatprep.subr.mxu0 0.0
  %1626 = vmatpush1.msra.mxu0 0.0
  %1627 = vmatprep.subr.mxu0 0.0
  %1628 = vmatpush1.msra.mxu0 0.0
  %1629 = vmatprep.subr.mxu0 0.0
  %1630 = vmatpush1.msra.mxu0 0.0
  %1631 = vmatprep.subr.mxu0 0.0
  %1632 = vmatpush1.msra.mxu0 0.0
  %1633 = vmatprep.subr.mxu0 0.0
  %1634 = vmatpush1.msra.mxu0 0.0
  %1635 = vmatprep.subr.mxu0 0.0
  %1636 = vmatpush1.msra.mxu0 0.0
  %1637 = vmatprep.subr.mxu0 0.0
  %1638 = vmatpush1.msra.mxu0 0.0
  %1639 = vmatprep.subr.mxu0 0.0
  %1640 = vmatpush1.msra.mxu0 0.0
  %1641 = vmatprep.subr.mxu0 0.0
  %1642 = vmatpush1.msra.mxu0 0.0
  %1643 = vmatprep.subr.mxu0 0.0
  %1644 = vmatpush1.msra.mxu0 0.0
  %1645 = vmatprep.subr.mxu0 0.0
  %1646 = vmatpush1.msra.mxu0 0.0
  %1647 = vmatprep.subr.mxu0 0.0
  %1648 = vmatpush1.msra.mxu0 0.0
  %1649 = vmatprep.subr.mxu0 0.0
  %1650 = vmatpush1.msra.mxu0 0.0
  %1651 = vmatprep.subr.mxu0 0.0
  %1652 = vmatpush1.msra.mxu0 0.0
  %1653 = vmatprep.subr.mxu0 0.0
  %1654 = vmatpush1.msra.mxu0 0.0
  %1655 = vmatprep.subr.mxu0 0.0
  %1656 = vmatpush1.msra.mxu0 0.0
  %1657 = vmatprep.subr.mxu0 0.0
  %1658 = vmatpush1.msra.mxu0 0.0
  %1659 = vmatprep.subr.mxu0 0.0
  %1660 = vmatpush1.msra.mxu0 0.0
  %1661 = vmatprep.subr.mxu0 0.0
  %1662 = vmatpush1.msra.mxu0 0.0
  %1663 = vmatprep.subr.mxu0 0.0
  %1664 = vmatpush1.msra.mxu0 0.0
  %1665 = vmatprep.subr.mxu0 0.0
  %1666 = vmatpush1.msra.mxu0 0.0
  %1667 = vmatprep.subr.mxu0 0.0
  %1668 = vmatpush1.msra.mxu0 0.0
  %1669 = vmatprep.subr.mxu0 0.0
  %1670 = vmatpush1.msra.mxu0 0.0
  %1671 = vmatprep.subr.mxu0 0.0
  %1672 = vmatpush1.msra.mxu0 0.0
  %1673 = vmatprep.subr.mxu0 0.0
  %1674 = vmatpush1.msra.mxu0 0.0
  %1675 = vmatprep.subr.mxu0 0.0
  %1676 = vmatpush1.msra.mxu0 0.0
  %1677 = vmatprep.mubr.f32.mxu0 0.0
  %1678 = vmatmul.mubr.f32.gmra.mrb[0].mxu0 %v1611
  %v1679 = vpop.f32.mrb[0].mxu0
  %v1680 = vpop.f32.mrb[0].mxu0
  %v1681 = vadd.f32 0.0, %v1680
  %1682 = vdwg.mxu0
  %v1683 = vadd.f32 %v200, %v1681
  %1685 = vrot.lane.b32.xlu0 %v1607, 32
  %v1686 = vpop.permute.xlu0 %1685
  %v1687 = vsel %vm234, %v1686, 0
  %1689 = vmatprep.subr.mxu0 %v184
  %1690 = vmatpush1.msra.mxu0 %v183
  %1691 = vmatprep.subr.mxu0 %v186
  %1692 = vmatpush1.msra.mxu0 %v185
  %1693 = vmatprep.subr.mxu0 %v188
  %1694 = vmatpush1.msra.mxu0 %v187
  %1695 = vmatprep.subr.mxu0 %v190
  %1696 = vmatpush1.msra.mxu0 %v189
  %1697 = vmatprep.subr.mxu0 0.0
  %1698 = vmatpush1.msra.mxu0 0.0
  %1699 = vmatprep.subr.mxu0 0.0
  %1700 = vmatpush1.msra.mxu0 0.0
  %1701 = vmatprep.subr.mxu0 0.0
  %1702 = vmatpush1.msra.mxu0 0.0
  %1703 = vmatprep.subr.mxu0 0.0
  %1704 = vmatpush1.msra.mxu0 0.0
  %1705 = vmatprep.subr.mxu0 0.0
  %1706 = vmatpush1.msra.mxu0 0.0
  %1707 = vmatprep.subr.mxu0 0.0
  %1708 = vmatpush1.msra.mxu0 0.0
  %1709 = vmatprep.subr.mxu0 0.0
  %1710 = vmatpush1.msra.mxu0 0.0
  %1711 = vmatprep.subr.mxu0 0.0
  %1712 = vmatpush1.msra.mxu0 0.0
  %1713 = vmatprep.subr.mxu0 0.0
  %1714 = vmatpush1.msra.mxu0 0.0
  %1715 = vmatprep.subr.mxu0 0.0
  %1716 = vmatpush1.msra.mxu0 0.0
  %1717 = vmatprep.subr.mxu0 0.0
  %1718 = vmatpush1.msra.mxu0 0.0
  %1719 = vmatprep.subr.mxu0 0.0
  %1720 = vmatpush1.msra.mxu0 0.0
  %1721 = vmatprep.subr.mxu0 0.0
  %1722 = vmatpush1.msra.mxu0 0.0
  %1723 = vmatprep.subr.mxu0 0.0
  %1724 = vmatpush1.msra.mxu0 0.0
  %1725 = vmatprep.subr.mxu0 0.0
  %1726 = vmatpush1.msra.mxu0 0.0
  %1727 = vmatprep.subr.mxu0 0.0
  %1728 = vmatpush1.msra.mxu0 0.0
  %1729 = vmatprep.subr.mxu0 0.0
  %1730 = vmatpush1.msra.mxu0 0.0
  %1731 = vmatprep.subr.mxu0 0.0
  %1732 = vmatpush1.msra.mxu0 0.0
  %1733 = vmatprep.subr.mxu0 0.0
  %1734 = vmatpush1.msra.mxu0 0.0
  %1735 = vmatprep.subr.mxu0 0.0
  %1736 = vmatpush1.msra.mxu0 0.0
  %1737 = vmatprep.subr.mxu0 0.0
  %1738 = vmatpush1.msra.mxu0 0.0
  %1739 = vmatprep.subr.mxu0 0.0
  %1740 = vmatpush1.msra.mxu0 0.0
  %1741 = vmatprep.subr.mxu0 0.0
  %1742 = vmatpush1.msra.mxu0 0.0
  %1743 = vmatprep.subr.mxu0 0.0
  %1744 = vmatpush1.msra.mxu0 0.0
  %1745 = vmatprep.subr.mxu0 0.0
  %1746 = vmatpush1.msra.mxu0 0.0
  %1747 = vmatprep.subr.mxu0 0.0
  %1748 = vmatpush1.msra.mxu0 0.0
  %1749 = vmatprep.subr.mxu0 0.0
  %1750 = vmatpush1.msra.mxu0 0.0
  %1751 = vmatprep.subr.mxu0 0.0
  %1752 = vmatpush1.msra.mxu0 0.0
  %1753 = vmatprep.mubr.f32.mxu0 0.0
  %1754 = vmatmul.mubr.f32.gmra.mrb[0].mxu0 %v1687
  %v1755 = vpop.f32.mrb[0].mxu0
  %v1756 = vpop.f32.mrb[0].mxu0
  %v1757 = vadd.f32 0.0, %v1756
  %1758 = vdwg.mxu0
  %v1759 = vadd.f32 %v1683, %v1757
  %v1760 = vxor.u32 %v1759, 2147483648
  %v1761 = vmul.f32 %v1760, 1.442695
  %v1762 = vpow.pop %v1761
  %v1763 = vadd.f32 %v1762, 1.0
  %v1764 = vrcp.pop %v1763
  %v1765 = vmul.f32 1.0, %v1764
  %v1766 = vmul.f32 %v1765, 2.0
  %v1767 = vsub.f32 %v1766, 1.0
  %v1768 = vmul.f32 %v1765, %v1601
  %1770 = vrot.lane.b32.xlu0 %v1767, 64
  %v1771 = vpop.permute.xlu0 %1770
  %v1773 = vmul.f32 %v1765, %v1771
  %1775 = vrot.lane.b32.xlu0 %v1773, 32
  %v1776 = vpop.permute.xlu0 %1775
  %v1778 = vadd.f32 %v1768, %v1776
  %v1779 = vtanh.pop %v1778
  %1781 = vrot.lane.b32.xlu0 %v1779, 64
  %v1782 = vpop.permute.xlu0 %1781
  %v1784 = vmul.f32 %v1765, %v1782
  %v1785 = vld [vmem:[%s5] sm:$0xff]
  %v1786 = vld [vmem:[%s5 + $0x8] sm:$0xff]
  %v1787 = vld [vmem:[%s5 + $0x10] sm:$0xff]
  %v1788 = vld [vmem:[%s5 + $0x18] sm:$0xff]
  %v1789 = vld [vmem:[%s6] sm:$0x1]
  %v1791 = vlaneseq
  %v1792 = vshrl.u32 %v1791, 7
  %v1793 = vsub.s32 0, %v1792
  %v1794 = vrot.slane %v1789, %v1793
  %1797 = vrot.lane.b32.xlu0 %v1784, 32
  %v1798 = vpop.permute.xlu0 %1797
  %v1799 = vsel %vm234, %v1798, 0
  %1801 = vmatprep.subr.mxu0 0.0
  %1802 = vmatpush1.msra.mxu0 %v1785
  %1803 = vmatprep.subr.mxu0 0.0
  %1804 = vmatpush1.msra.mxu0 %v1786
  %1805 = vmatprep.subr.mxu0 0.0
  %1806 = vmatpush1.msra.mxu0 %v1787
  %1807 = vmatprep.subr.mxu0 0.0
  %1808 = vmatpush1.msra.mxu0 %v1788
  %1809 = vmatprep.subr.mxu0 0.0
  %1810 = vmatpush1.msra.mxu0 0.0
  %1811 = vmatprep.subr.mxu0 0.0
  %1812 = vmatpush1.msra.mxu0 0.0
  %1813 = vmatprep.subr.mxu0 0.0
  %1814 = vmatpush1.msra.mxu0 0.0
  %1815 = vmatprep.subr.mxu0 0.0
  %1816 = vmatpush1.msra.mxu0 0.0
  %1817 = vmatprep.subr.mxu0 0.0
  %1818 = vmatpush1.msra.mxu0 0.0
  %1819 = vmatprep.subr.mxu0 0.0
  %1820 = vmatpush1.msra.mxu0 0.0
  %1821 = vmatprep.subr.mxu0 0.0
  %1822 = vmatpush1.msra.mxu0 0.0
  %1823 = vmatprep.subr.mxu0 0.0
  %1824 = vmatpush1.msra.mxu0 0.0
  %1825 = vmatprep.subr.mxu0 0.0
  %1826 = vmatpush1.msra.mxu0 0.0
  %1827 = vmatprep.subr.mxu0 0.0
  %1828 = vmatpush1.msra.mxu0 0.0
  %1829 = vmatprep.subr.mxu0 0.0
  %1830 = vmatpush1.msra.mxu0 0.0
  %1831 = vmatprep.subr.mxu0 0.0
  %1832 = vmatpush1.msra.mxu0 0.0
  %1833 = vmatprep.subr.mxu0 0.0
  %1834 = vmatpush1.msra.mxu0 0.0
  %1835 = vmatprep.subr.mxu0 0.0
  %1836 = vmatpush1.msra.mxu0 0.0
  %1837 = vmatprep.subr.mxu0 0.0
  %1838 = vmatpush1.msra.mxu0 0.0
  %1839 = vmatprep.subr.mxu0 0.0
  %1840 = vmatpush1.msra.mxu0 0.0
  %1841 = vmatprep.subr.mxu0 0.0
  %1842 = vmatpush1.msra.mxu0 0.0
  %1843 = vmatprep.subr.mxu0 0.0
  %1844 = vmatpush1.msra.mxu0 0.0
  %1845 = vmatprep.subr.mxu0 0.0
  %1846 = vmatpush1.msra.mxu0 0.0
  %1847 = vmatprep.subr.mxu0 0.0
  %1848 = vmatpush1.msra.mxu0 0.0
  %1849 = vmatprep.subr.mxu0 0.0
  %1850 = vmatpush1.msra.mxu0 0.0
  %1851 = vmatprep.subr.mxu0 0.0
  %1852 = vmatpush1.msra.mxu0 0.0
  %1853 = vmatprep.subr.mxu0 0.0
  %1854 = vmatpush1.msra.mxu0 0.0
  %1855 = vmatprep.subr.mxu0 0.0
  %1856 = vmatpush1.msra.mxu0 0.0
  %1857 = vmatprep.subr.mxu0 0.0
  %1858 = vmatpush1.msra.mxu0 0.0
  %1859 = vmatprep.subr.mxu0 0.0
  %1860 = vmatpush1.msra.mxu0 0.0
  %1861 = vmatprep.subr.mxu0 0.0
  %1862 = vmatpush1.msra.mxu0 0.0
  %1863 = vmatprep.subr.mxu0 0.0
  %1864 = vmatpush1.msra.mxu0 0.0
  %1865 = vmatprep.mubr.f32.mxu0 0.0
  %1866 = vmatmul.mubr.f32.gmra.mrb[0].mxu0 %v443
  %v1867 = vpop.f32.mrb[0].mxu0
  %v1868 = vadd.f32 %v1794, %v1867
  %v1869 = vpop.f32.mrb[0].mxu0
  %1870 = vmatprep.mubr.f32.mxu0 0.0
  %1871 = vmatmul.mubr.f32.gmra.mrb[0].mxu0 %v651
  %v1872 = vpop.f32.mrb[0].mxu0
  %v1873 = vadd.f32 %v1794, %v1872
  %v1874 = vpop.f32.mrb[0].mxu0
  %1875 = vmatprep.mubr.f32.mxu0 0.0
  %1876 = vmatmul.mubr.f32.gmra.mrb[0].mxu0 %v859
  %v1877 = vpop.f32.mrb[0].mxu0
  %v1878 = vadd.f32 %v1794, %v1877
  %v1879 = vpop.f32.mrb[0].mxu0
  %1880 = vmatprep.mubr.f32.mxu0 0.0
  %1881 = vmatmul.mubr.f32.gmra.mrb[0].mxu0 %v1067
  %v1882 = vpop.f32.mrb[0].mxu0
  %v1883 = vadd.f32 %v1794, %v1882
  %v1884 = vpop.f32.mrb[0].mxu0
  %1885 = vmatprep.mubr.f32.mxu0 0.0
  %1886 = vmatmul.mubr.f32.gmra.mrb[0].mxu0 %v1275
  %v1887 = vpop.f32.mrb[0].mxu0
  %v1888 = vadd.f32 %v1794, %v1887
  %v1889 = vpop.f32.mrb[0].mxu0
  %1890 = vmatprep.mubr.f32.mxu0 0.0
  %1891 = vmatmul.mubr.f32.gmra.mrb[0].mxu0 %v1483
  %v1892 = vpop.f32.mrb[0].mxu0
  %v1893 = vadd.f32 %v1794, %v1892
  %v1894 = vpop.f32.mrb[0].mxu0
  %1895 = vmatprep.mubr.f32.mxu0 0.0
  %1896 = vmatmul.mubr.f32.gmra.mrb[0].mxu0 %v1687
  %v1897 = vpop.f32.mrb[0].mxu0
  %v1898 = vadd.f32 %v1794, %v1897
  %v1899 = vpop.f32.mrb[0].mxu0
  %1900 = vmatprep.mubr.f32.mxu0 0.0
  %1901 = vmatmul.mubr.f32.gmra.mrb[0].mxu0 %v1799
  %v1902 = vpop.f32.mrb[0].mxu0
  %v1903 = vadd.f32 %v1794, %v1902
  %v1904 = vpop.f32.mrb[0].mxu0
  %1905 = vdwg.mxu0
  %vm1906 = vcmask 64512
  %v1907 = vsel %vm1906, %v1868, -inf
  %1908 = vmax.xlane.f32.xlu0 %v1907
  %v1909 = vpop.xlane.xlu0 %1908
  %v1910 = vsel %vm1906, %v1873, -inf
  %1911 = vmax.xlane.f32.xlu0 %v1910
  %v1912 = vpop.xlane.xlu0 %1911
  %v1913 = vsel %vm1906, %v1878, -inf
  %1914 = vmax.xlane.f32.xlu0 %v1913
  %v1915 = vpop.xlane.xlu0 %1914
  %v1916 = vsel %vm1906, %v1883, -inf
  %1917 = vmax.xlane.f32.xlu0 %v1916
  %v1918 = vpop.xlane.xlu0 %1917
  %v1919 = vsel %vm1906, %v1888, -inf
  %1920 = vmax.xlane.f32.xlu0 %v1919
  %v1921 = vpop.xlane.xlu0 %1920
  %v1922 = vsel %vm1906, %v1893, -inf
  %1923 = vmax.xlane.f32.xlu0 %v1922
  %v1924 = vpop.xlane.xlu0 %1923
  %v1925 = vsel %vm1906, %v1898, -inf
  %1926 = vmax.xlane.f32.xlu0 %v1925
  %v1927 = vpop.xlane.xlu0 %1926
  %v1928 = vsel %vm1906, %v1903, -inf
  %1929 = vmax.xlane.f32.xlu0 %v1928
  %v1930 = vpop.xlane.xlu0 %1929
  %v1931 = vsub.f32 %v1868, %v1909
  %v1932 = vsub.f32 %v1873, %v1912
  %v1933 = vsub.f32 %v1878, %v1915
  %v1934 = vsub.f32 %v1883, %v1918
  %v1935 = vsub.f32 %v1888, %v1921
  %v1936 = vsub.f32 %v1893, %v1924
  %v1937 = vsub.f32 %v1898, %v1927
  %v1938 = vsub.f32 %v1903, %v1930
  %v1939 = vmul.f32 %v1931, 1.442695
  %v1940 = vpow.pop %v1939
  %v1941 = vmul.f32 %v1932, 1.442695
  %v1942 = vpow.pop %v1941
  %v1943 = vmul.f32 %v1933, 1.442695
  %v1944 = vpow.pop %v1943
  %v1945 = vmul.f32 %v1934, 1.442695
  %v1946 = vpow.pop %v1945
  %v1947 = vmul.f32 %v1935, 1.442695
  %v1948 = vpow.pop %v1947
  %v1949 = vmul.f32 %v1936, 1.442695
  %v1950 = vpow.pop %v1949
  %v1951 = vmul.f32 %v1937, 1.442695
  %v1952 = vpow.pop %v1951
  %v1953 = vmul.f32 %v1938, 1.442695
  %v1954 = vpow.pop %v1953
  %v1955 = vsel %vm1906, %v1940, 0.0
  %1956 = vadd.xlane.f32.xlu0 %v1955
  %v1957 = vpop.xlane.xlu0 %1956
  %v1958 = vsel %vm1906, %v1942, 0.0
  %1959 = vadd.xlane.f32.xlu0 %v1958
  %v1960 = vpop.xlane.xlu0 %1959
  %v1961 = vsel %vm1906, %v1944, 0.0
  %1962 = vadd.xlane.f32.xlu0 %v1961
  %v1963 = vpop.xlane.xlu0 %1962
  %v1964 = vsel %vm1906, %v1946, 0.0
  %1965 = vadd.xlane.f32.xlu0 %v1964
  %v1966 = vpop.xlane.xlu0 %1965
  %v1967 = vsel %vm1906, %v1948, 0.0
  %1968 = vadd.xlane.f32.xlu0 %v1967
  %v1969 = vpop.xlane.xlu0 %1968
  %v1970 = vsel %vm1906, %v1950, 0.0
  %1971 = vadd.xlane.f32.xlu0 %v1970
  %v1972 = vpop.xlane.xlu0 %1971
  %v1973 = vsel %vm1906, %v1952, 0.0
  %1974 = vadd.xlane.f32.xlu0 %v1973
  %v1975 = vpop.xlane.xlu0 %1974
  %v1976 = vsel %vm1906, %v1954, 0.0
  %1977 = vadd.xlane.f32.xlu0 %v1976
  %v1978 = vpop.xlane.xlu0 %1977
  %v1979 = vrcp.pop %v1957
  %v1980 = vrcp.pop %v1960
  %v1981 = vrcp.pop %v1963
  %v1982 = vrcp.pop %v1966
  %v1983 = vrcp.pop %v1969
  %v1984 = vrcp.pop %v1972
  %v1985 = vrcp.pop %v1975
  %v1986 = vrcp.pop %v1978
  %v1987 = vmul.f32 %v1940, %v1979
  %v1988 = vmul.f32 %v1942, %v1980
  %v1989 = vmul.f32 %v1944, %v1981
  %v1990 = vmul.f32 %v1946, %v1982
  %v1991 = vmul.f32 %v1948, %v1983
  %v1992 = vmul.f32 %v1950, %v1984
  %v1993 = vmul.f32 %v1952, %v1985
  %v1994 = vmul.f32 %v1954, %v1986
  %1995 = vst.msk [vmem:[%s7] sm:$0xff] %vm1906, %v1987
  %1996 = vst.msk [vmem:[%s7 + $0x8] sm:$0xff] %vm1906, %v1988
  %1997 = vst.msk [vmem:[%s7 + $0x10] sm:$0xff] %vm1906, %v1989
  %1998 = vst.msk [vmem:[%s7 + $0x18] sm:$0xff] %vm1906, %v1990
  %1999 = vst.msk [vmem:[%s7 + $0x20] sm:$0xff] %vm1906, %v1991
  %2000 = vst.msk [vmem:[%s7 + $0x28] sm:$0xff] %vm1906, %v1992
  %2001 = vst.msk [vmem:[%s7 + $0x30] sm:$0xff] %vm1906, %v1993
  %2002 = vst.msk [vmem:[%s7 + $0x38] sm:$0xff] %vm1906, %v1994
  // Predicated region
  $region30: #{lstm_model_forward.1} parent=0 // pred_check
    _
  $region31: #{lstm_model_forward.1} parent=0 // pred_check_branch
    %2004 = sbr.rel (0) target = $region33
  $region32: #{lstm_model_forward.1} parent=0 // pred_region
    _
  $region33: #{lstm_model_forward.1} parent=0 // pred_fallthru
    _
  // Predicated region
  $region34: #{lstm_model_forward.1} parent=0 // pred_check
    _
  $region35: #{lstm_model_forward.1} parent=0 // pred_check_branch
    %2006 = sbr.rel (0) target = $region37
  $region36: #{lstm_model_forward.1} parent=0 // pred_region
    _
  $region37: #{lstm_model_forward.1} parent=0 // pred_fallthru
    _

</llo_original>
